<compile_context>
chip_gen: v7x
topology: tpu7x:2x2x1
jax: 0.10.0
libtpu: 0.0.40
codegen_flags: <defaults>
</compile_context>

<pallas_src>
import functools

import jax
import jax.numpy as jnp
from jax.experimental import pallas as pl
from jax.experimental.pallas import tpu as pltpu

_NEG = -1e30  # "minus infinity" for masking


# --------------------------------------------------------------------------
# tiling helpers
# --------------------------------------------------------------------------
def _sublane_tile(n, pref):
    """Largest tile <= pref that divides n and is a multiple of 8 (else n)."""
    if n % 8:
        return n
    t = min(pref, n)
    t -= t % 8
    while n % t:
        t -= 8
    return t


def _lane_tile(n, pref):
    """Largest tile <= pref that divides n and is a multiple of 128 (else n)."""
    if n % 128:
        return n
    t = min(pref, n)
    t -= t % 128
    while n % t:
        t -= 128
    return t


# --------------------------------------------------------------------------
# Kernel 1: fused Linear (+ optional ReLU):  y = x @ W.T + b
#   - large row tiles, lane-dense (padded to multiple of 128) output stores
# --------------------------------------------------------------------------
def _linear_kernel(x_ref, wt_ref, b_ref, o_ref, *, relu):
    y = jnp.dot(x_ref[...], wt_ref[...], preferred_element_type=jnp.float32)
    y = y + b_ref[...]
    if relu:
        y = jnp.maximum(y, 0.0)
    o_ref[...] = y


def linear(x, w, b=None, *, relu=False):
    """nn.Linear semantics: w is (out, in), b is (out,) or None (no bias)."""
    m, kdim = x.shape
    n = w.shape[0]
    if b is None:
        b = jnp.zeros((n,), jnp.float32)
    n_pad = ((n + 127) // 128) * 128                 # lane-dense output width
    wt = jnp.zeros((kdim, n_pad), jnp.float32).at[:, :n].set(w.T)
    b2 = jnp.zeros((1, n_pad), jnp.float32).at[:, :n].set(b.reshape(1, n))
    tm = _sublane_tile(m, 512)
    y = pl.pallas_call(
        functools.partial(_linear_kernel, relu=relu),
        out_shape=jax.ShapeDtypeStruct((m, n_pad), jnp.float32),
        grid=(m // tm,),
        in_specs=[
            pl.BlockSpec((tm, kdim), lambda i: (i, 0)),
            pl.BlockSpec((kdim, n_pad), lambda i: (0, 0)),
            pl.BlockSpec((1, n_pad), lambda i: (0, 0)),
        ],
        out_specs=pl.BlockSpec((tm, n_pad), lambda i: (i, 0)),
        compiler_params=pltpu.CompilerParams(dimension_semantics=("parallel",)),
    )(x, wt, b2)
    return y[:, :n] if n_pad != n else y


# --------------------------------------------------------------------------
# Kernel 2: GCNMasker, transposed dense adjacency, tiled over source rows.
#   Per tile (lane = original row r, sublane = original col c):
#     Z[c, r] = u[r] + v[c] where an edge (r -> c) exists, else -inf
#     grouped sparsemax per original row (over its edges)
#     torch.topk(k, dim=1) threshold per original row
#   Output block is already A^T (i.e. [dst, src]) for the GCN aggregation.
# --------------------------------------------------------------------------
def _masker_kernel(u_ref, v_ref, m_ref, o_ref, zm_scr, *, k):
    n, tr = m_ref.shape
    mask = m_ref[...] > 0                       # (N, TR) bf16 mask -> bool
    z = jnp.where(mask, u_ref[...] + v_ref[...], _NEG)   # transposed edge scores
    zm_scr[...] = z                             # VMEM scratch for column slicing

    zero = jnp.zeros((1, tr), jnp.float32)

    # sparsemax per original row (lane), count-based support test
    def sparsemax_body(c, carry):
        supp_size, supp_sum = carry
        zc = zm_scr[pl.ds(c, 1), :]             # (1, TR) candidate value per row
        ge = z >= zc                            # non-edges (z == -inf) auto-excluded
        rank = jnp.sum(jnp.where(ge, 1.0, 0.0), axis=0, keepdims=True)
        ssum = jnp.sum(jnp.where(ge, z, 0.0), axis=0, keepdims=True)
        valid = zc > 0.5 * _NEG                 # candidate column is a real edge
        in_supp = valid & (1.0 + rank * zc > ssum)
        supp_size = supp_size + jnp.where(in_supp, 1.0, 0.0)
        supp_sum = supp_sum + jnp.where(in_supp, zc, 0.0)
        return supp_size, supp_sum

    supp_size, supp_sum = jax.lax.fori_loop(0, n, sparsemax_body, (zero, zero))
    tau = (supp_sum - 1.0) / jnp.maximum(supp_size, 1.0)          # (1, TR)
    adj = jnp.maximum(z - tau, 0.0)             # non-edges -> exactly 0

    # k-th largest value per dense original row (duplicates counted, like
    # torch.topk): k-step unrolled loop over distinct maxima.
    thresh = jnp.full((1, tr), _NEG, jnp.float32)
    cur = adj
    for _ in range(k):                          # k is tiny & static -> unrolled
        tj = jnp.max(cur, axis=0, keepdims=True)
        cnt = jnp.sum(jnp.where(adj >= tj, 1.0, 0.0), axis=0, keepdims=True)
        thresh = jnp.maximum(thresh, jnp.where(cnt >= float(k), tj, _NEG))
        cur = jnp.where(adj >= tj, _NEG, adj)

    o_ref[...] = jnp.where(adj >= thresh, adj, 0.0)


def masker_adj_t(u_row, v_col, mask_t, k):
    """Returns new_adj^T (i.e. [dst, src]) directly."""
    n = mask_t.shape[0]
    tr = _lane_tile(n, 256)
    return pl.pallas_call(
        functools.partial(_masker_kernel, k=k),
        out_shape=jax.ShapeDtypeStruct((n, n), jnp.float32),
        grid=(n // tr,),
        in_specs=[
            pl.BlockSpec((1, tr), lambda i: (0, i)),   # u: per-original-row score
            pl.BlockSpec((n, 1), lambda i: (0, 0)),    # v: per-original-col score
            pl.BlockSpec((n, tr), lambda i: (0, i)),   # transposed edge mask (bf16)
        ],
        out_specs=pl.BlockSpec((n, tr), lambda i: (0, i)),
        scratch_shapes=[pltpu.VMEM((n, tr), jnp.float32)],
        compiler_params=pltpu.CompilerParams(dimension_semantics=("parallel",)),
    )(u_row, v_col, mask_t)


# --------------------------------------------------------------------------
# Kernel 3a: GCN degree / D^-1/2 (computed ONCE for both GCNConv layers).
#   add_remaining_self_loops(fill=1); deg[dst] = sum_src A^T[dst, src]
# --------------------------------------------------------------------------
def _gcn_deg_kernel(a_t_ref, dinv_ref):
    i = pl.program_id(0)
    tr, n = a_t_ref.shape
    a = a_t_ref[...]
    row_g = i * tr + jax.lax.broadcasted_iota(jnp.int32, (tr, 1), 0)
    col = jax.lax.broadcasted_iota(jnp.int32, (1, n), 1)
    a_sl = jnp.where((row_g == col) & (a == 0.0), 1.0, a)   # self-loop fill
    deg = jnp.sum(a_sl, axis=1, keepdims=True)
    dinv_ref[...] = jnp.where(deg > 0.0, jax.lax.rsqrt(deg), 0.0)


def gcn_deg(a_t):
    n = a_t.shape[0]
    tr = _sublane_tile(n, 256)
    return pl.pallas_call(
        _gcn_deg_kernel,
        out_shape=jax.ShapeDtypeStruct((n, 1), jnp.float32),
        grid=(n // tr,),
        in_specs=[pl.BlockSpec((tr, n), lambda i: (i, 0))],
        out_specs=pl.BlockSpec((tr, 1), lambda i: (i, 0)),
        compiler_params=pltpu.CompilerParams(dimension_semantics=("parallel",)),
    )(a_t)


# --------------------------------------------------------------------------
# Kernel 3b: GCN aggregation (+ fused bias & ReLU), row-tiled, reused twice.
#   out = relu(dinv[dst] * (A_sl^T @ (dinv[src] * XW)) + b)
# --------------------------------------------------------------------------
def _gcn_agg_kernel(a_t_ref, dinv_all_ref, dinv_dst_ref, xw_ref, b_ref, o_ref):
    i = pl.program_id(0)
    tr, n = a_t_ref.shape
    a = a_t_ref[...]
    row_g = i * tr + jax.lax.broadcasted_iota(jnp.int32, (tr, 1), 0)
    col = jax.lax.broadcasted_iota(jnp.int32, (1, n), 1)
    a_sl = jnp.where((row_g == col) & (a == 0.0), 1.0, a)   # self-loop fill
    msg = xw_ref[...] * dinv_all_ref[...]                   # scale by dinv[src]
    agg = jnp.dot(a_sl, msg, preferred_element_type=jnp.float32)
    o_ref[...] = jnp.maximum(dinv_dst_ref[...] * agg + b_ref[...], 0.0)


def gcn_agg(a_t, dinv, xw, b):
    n, h = xw.shape
    tr = _sublane_tile(n, 256)
    return pl.pallas_call(
        _gcn_agg_kernel,
        out_shape=jax.ShapeDtypeStruct((n, h), jnp.float32),
        grid=(n // tr,),
        in_specs=[
            pl.BlockSpec((tr, n), lambda i: (i, 0)),   # A^T row tile (dst rows)
            pl.BlockSpec((n, 1), lambda i: (0, 0)),    # dinv for all src nodes
            pl.BlockSpec((tr, 1), lambda i: (i, 0)),   # dinv for dst tile
            pl.BlockSpec((n, h), lambda i: (0, 0)),    # X @ W^T for all nodes
            pl.BlockSpec((1, h), lambda i: (0, 0)),    # bias
        ],
        out_specs=pl.BlockSpec((tr, h), lambda i: (i, 0)),
        compiler_params=pltpu.CompilerParams(dimension_semantics=("parallel",)),
    )(a_t, dinv, dinv, xw, b.reshape(1, -1))


# --------------------------------------------------------------------------
# Kernel 4: fused global_mean_pool + global_max_pool -> (B, 2H)
# --------------------------------------------------------------------------
def _pool_kernel(oh_ref, x_ref, o_ref):
    oh = oh_ref[...]                         # (B, N) one-hot membership
    x = x_ref[...]                           # (N, H)
    h = x.shape[1]
    cnt = jnp.sum(oh, axis=1, keepdims=True)
    mean = jnp.dot(oh, x, preferred_element_type=jnp.float32) / jnp.maximum(cnt, 1.0)
    oh_t = oh.T                              # single in-kernel transpose (N, B)
    rows = []
    for g in range(oh.shape[0]):             # B is small & static -> unrolled
        xm = jnp.where(oh_t[:, g:g + 1] > 0.0, x, _NEG)
        rows.append(jnp.max(xm, axis=0, keepdims=True))
    mx = jnp.concatenate(rows, axis=0)       # (B, H)
    o_ref[:, :h] = mean
    o_ref[:, h:] = mx


def global_pool(x, oh_bn):
    b = oh_bn.shape[0]
    h = x.shape[1]
    return pl.pallas_call(
        _pool_kernel,
        out_shape=jax.ShapeDtypeStruct((b, 2 * h), jnp.float32),
    )(oh_bn, x)


# --------------------------------------------------------------------------
# GCNBack / GCNBB forward (glue orchestrating the kernels)
# --------------------------------------------------------------------------
def gcn_back_forward(p, x, mask_t, oh_bn, *, nhid, k):
    n = x.shape[0]
    # masker: x = relu(Linear(F, nhid)(x))
    x1 = linear(x, p['mask_w'], p['mask_b'], relu=True)
    # edge score: score[r,c] = x1[r]·wa + x1[c]·wb + bias   (tiny matvecs: glue)
    wa = p['edge_w'][0, :nhid]
    wb = p['edge_w'][0, nhid:]
    u_row = (x1 @ wa + p['edge_b'][0]).reshape(1, n)
    v_col = (x1 @ wb).reshape(n, 1)
    # sparsemax + topk mask; output is already A^T (no host transpose)
    a_t = masker_adj_t(u_row, v_col, mask_t, k)
    # TODO(synk): dense_to_sparse has dynamic output shape; GCNConv is applied
    #             on the equivalent dense adjacency instead (same math).
    dinv = gcn_deg(a_t)                               # normalization computed once
    h1 = gcn_agg(a_t, dinv, linear(x1, p['gcn1_w']), p['gcn1_b'])
    h2 = gcn_agg(a_t, dinv, linear(h1, p['gcn2_w']), p['gcn2_b'])
    pooled = global_pool(h2, oh_bn)                   # cat([mean, max], dim=1)
    z = linear(pooled, p['fc1_w'], p['fc1_b'], relu=True)
    z = linear(z, p['fc2_w'], p['fc2_b'], relu=True)
    return z


def gcnbb_forward(params, x, edge_index, batch, *, nhid, k, num_graphs):
    n = x.shape[0]
    row, col = edge_index[0], edge_index[1]
    # transposed edge-existence mask, bf16 (narrow dtype), built once (glue scatter)
    mask_t = jnp.zeros((n, n), jnp.bfloat16).at[col, row].set(1.0)
    oh_bn = (batch[None, :] == jnp.arange(num_graphs)[:, None]).astype(jnp.float32)
    z_c = gcn_back_forward(params['model_c'], x, mask_t, oh_bn, nhid=nhid, k=k)
    z_b = gcn_back_forward(params['model_b'], x, mask_t, oh_bn, nhid=nhid, k=k)
    out_c = linear(z_c, params['fc_c_w'], params['fc_c_b'], relu=False)
    out_b = linear(z_b, params['fc_b_w'], params['fc_b_b'], relu=False)
    return out_c, out_b


# --------------------------------------------------------------------------
# Deterministic parameter init (shapes follow the nn.Module __init__)
# --------------------------------------------------------------------------
def init_linear_params(key, out_dim, in_dim):
    kw, kb = jax.random.split(key)
    w = jax.random.normal(kw, (out_dim, in_dim), jnp.float32) / jnp.sqrt(float(in_dim))
    b = jax.random.normal(kb, (out_dim,), jnp.float32) * 0.05
    return w, b


def init_back_params(key, num_features, nhid):
    keys = jax.random.split(key, 6)
    p = {}
    p['mask_w'], p['mask_b'] = init_linear_params(keys[0], nhid, num_features)
    p['edge_w'], p['edge_b'] = init_linear_params(keys[1], 1, 2 * nhid)
    p['gcn1_w'], p['gcn1_b'] = init_linear_params(keys[2], nhid, nhid)
    p['gcn2_w'], p['gcn2_b'] = init_linear_params(keys[3], nhid, nhid)
    p['fc1_w'], p['fc1_b'] = init_linear_params(keys[4], 2 * nhid, 2 * nhid)
    p['fc2_w'], p['fc2_b'] = init_linear_params(keys[5], nhid, 2 * nhid)
    return p


if __name__ == "__main__":
    NUM_FEATURES, NHID, NUM_CLASSES, NUM_EDGE_PRESERVE = 8, 32, 3, 2
    NODES_PER_GRAPH, NUM_GRAPHS = 8, 2
    N = NODES_PER_GRAPH * NUM_GRAPHS

    key = jax.random.PRNGKey(0)
    kx, kc, kbk, khc, khb = jax.random.split(key, 5)

    x = jax.random.normal(kx, (N, NUM_FEATURES), jnp.float32)

    rows, cols = [], []
    for g in range(NUM_GRAPHS):
        base = g * NODES_PER_GRAPH
        for i in range(NODES_PER_GRAPH):
            for d in (1, 2, 3):
                rows.append(base + i)
                cols.append(base + (i + d) % NODES_PER_GRAPH)
    edge_index = jnp.array([rows, cols], dtype=jnp.int32)
    batch = jnp.repeat(jnp.arange(NUM_GRAPHS, dtype=jnp.int32), NODES_PER_GRAPH)

    params = {
        'model_c': init_back_params(kc, NUM_FEATURES, NHID),
        'model_b': init_back_params(kbk, NUM_FEATURES, NHID),
    }
    params['fc_c_w'], params['fc_c_b'] = init_linear_params(khc, NUM_CLASSES, NHID)
    params['fc_b_w'], params['fc_b_b'] = init_linear_params(khb, NUM_CLASSES, NHID)

    fwd = jax.jit(functools.partial(
        gcnbb_forward, nhid=NHID, k=NUM_EDGE_PRESERVE, num_graphs=NUM_GRAPHS))
    z_c, z_b = fwd(params, x, edge_index, batch)
    jax.block_until_ready((z_c, z_b))

    assert z_c.shape == (NUM_GRAPHS, NUM_CLASSES)
    assert z_b.shape == (NUM_GRAPHS, NUM_CLASSES)
    assert bool(jnp.all(jnp.isfinite(z_c))) and bool(jnp.all(jnp.isfinite(z_b)))
    print("KERNEL_OK")
</pallas_src>

<mosaic_0001>
module attributes {stable_mosaic.version = 11 : i64} {
  func.func @_linear_kernel(%arg0: i32, %arg1: memref<16x8xf32, #tpu.memory_space<vmem>>, %arg2: memref<8x128xf32, #tpu.memory_space<vmem>>, %arg3: memref<1x128xf32, #tpu.memory_space<vmem>>, %arg4: memref<16x128xf32, #tpu.memory_space<vmem>>) attributes {dimension_semantics = [#tpu.dimension_semantics<parallel>], iteration_bounds = array<i64: 1>, scalar_prefetch = 0 : i64, scratch_operands = 0 : i64, tpu.core_type = #tpu.core_type<tc>, window_params = [{transform_indices = @transform_0, window_bounds = array<i64: 16, 8>}, {pipeline_mode = #tpu.pipeline_mode<synchronous>, transform_indices = @transform_1, window_bounds = array<i64: 8, 128>}, {pipeline_mode = #tpu.pipeline_mode<synchronous>, transform_indices = @transform_2, window_bounds = array<i64: 1, 128>}, {transform_indices = @transform_3, window_bounds = array<i64: 16, 128>}]} {
    %c0 = arith.constant 0 : index
    %c0_0 = arith.constant 0 : index
    %0 = vector.load %arg1[%c0, %c0_0] : memref<16x8xf32, #tpu.memory_space<vmem>>, vector<16x8xf32>
    %c0_1 = arith.constant 0 : index
    %c0_2 = arith.constant 0 : index
    %1 = vector.load %arg2[%c0_1, %c0_2] : memref<8x128xf32, #tpu.memory_space<vmem>>, vector<8x128xf32>
    %cst = arith.constant dense<0.000000e+00> : vector<16x128xf32>
    %2 = tpu.matmul %0, %1, %cst {dimension_numbers = #tpu.dot_dimension_numbers<[1], [0], [0], [1], [0, 0, 1, 1], [], []>} : vector<16x8xf32>, vector<8x128xf32>, vector<16x128xf32> -> vector<16x128xf32>
    %c0_3 = arith.constant 0 : index
    %c0_4 = arith.constant 0 : index
    %3 = vector.load %arg3[%c0_3, %c0_4] : memref<1x128xf32, #tpu.memory_space<vmem>>, vector<1x128xf32>
    %4 = vector.broadcast %3 : vector<1x128xf32> to vector<16x128xf32>
    %5 = arith.addf %2, %4 : vector<16x128xf32>
    %cst_5 = arith.constant 0.000000e+00 : f32
    %6 = vector.broadcast %cst_5 : f32 to vector<16x128xf32>
    %7 = arith.maximumf %5, %6 : vector<16x128xf32>
    %c0_6 = arith.constant 0 : index
    %c0_7 = arith.constant 0 : index
    %8 = vector.load %arg4[%c0_6, %c0_7] : memref<16x128xf32, #tpu.memory_space<vmem>>, vector<16x128xf32>
    tpu.vector_store %arg4[%c0_6, %c0_7], %7 {strides = array<i32>} : memref<16x128xf32, #tpu.memory_space<vmem>>, vector<16x128xf32>,
    return
  }
  func.func @transform_0(%arg0: i32) -> (i32, i32) {
    %c0_i32 = arith.constant 0 : i32
    %c0_i32_0 = arith.constant 0 : i32
    return %arg0, %c0_i32 : i32, i32
  }
  func.func @transform_1(%arg0: i32) -> (i32, i32) {
    %c0_i32 = arith.constant 0 : i32
    %c0_i32_0 = arith.constant 0 : i32
    %c0_i32_1 = arith.constant 0 : i32
    return %c0_i32, %c0_i32_0 : i32, i32
  }
  func.func @transform_2(%arg0: i32) -> (i32, i32) {
    %c0_i32 = arith.constant 0 : i32
    %c0_i32_0 = arith.constant 0 : i32
    %c0_i32_1 = arith.constant 0 : i32
    return %c0_i32, %c0_i32_0 : i32, i32
  }
  func.func @transform_3(%arg0: i32) -> (i32, i32) {
    %c0_i32 = arith.constant 0 : i32
    %c0_i32_0 = arith.constant 0 : i32
    return %arg0, %c0_i32 : i32, i32
  }
}

module attributes {stable_mosaic.version = 11 : i64} {
  func.func @_masker_kernel(%arg0: i32, %arg1: memref<1x16xf32, #tpu.memory_space<vmem>>, %arg2: memref<16x1xf32, #tpu.memory_space<vmem>>, %arg3: memref<16x16xbf16, #tpu.memory_space<vmem>>, %arg4: memref<16x16xf32, #tpu.memory_space<vmem>>, %arg5: memref<16x16xf32, #tpu.memory_space<vmem>>) attributes {dimension_semantics = [#tpu.dimension_semantics<parallel>], iteration_bounds = array<i64: 1>, scalar_prefetch = 0 : i64, scratch_operands = 1 : i64, tpu.core_type = #tpu.core_type<tc>, window_params = [{transform_indices = @transform_0, window_bounds = array<i64: 1, 16>}, {pipeline_mode = #tpu.pipeline_mode<synchronous>, transform_indices = @transform_1, window_bounds = array<i64: 16, 1>}, {transform_indices = @transform_2, window_bounds = array<i64: 16, 16>}, {transform_indices = @transform_3, window_bounds = array<i64: 16, 16>}]} {
    %c0 = arith.constant 0 : index
    %c0_0 = arith.constant 0 : index
    %0 = vector.load %arg3[%c0, %c0_0] : memref<16x16xbf16, #tpu.memory_space<vmem>>, vector<16x16xbf16>
    %cst = arith.constant 0.000000e+00 : bf16
    %1 = vector.broadcast %cst : bf16 to vector<16x16xbf16>
    %2 = arith.cmpf ogt, %0, %1 : vector<16x16xbf16>
    %c0_1 = arith.constant 0 : index
    %c0_2 = arith.constant 0 : index
    %3 = vector.load %arg1[%c0_1, %c0_2] : memref<1x16xf32, #tpu.memory_space<vmem>>, vector<1x16xf32>
    %c0_3 = arith.constant 0 : index
    %c0_4 = arith.constant 0 : index
    %4 = vector.load %arg2[%c0_3, %c0_4] : memref<16x1xf32, #tpu.memory_space<vmem>>, vector<16x1xf32>
    %5 = vector.broadcast %3 : vector<1x16xf32> to vector<16x16xf32>
    %6 = vector.broadcast %4 : vector<16x1xf32> to vector<16x16xf32>
    %7 = arith.addf %5, %6 : vector<16x16xf32>
    %cst_5 = arith.constant -1.000000e+30 : f32
    %8 = vector.broadcast %cst_5 : f32 to vector<16x16xf32>
    %9 = arith.select %2, %7, %8 : vector<16x16xi1>, vector<16x16xf32>
    %c0_6 = arith.constant 0 : index
    %c0_7 = arith.constant 0 : index
    %10 = vector.load %arg5[%c0_6, %c0_7] : memref<16x16xf32, #tpu.memory_space<vmem>>, vector<16x16xf32>
    tpu.vector_store %arg5[%c0_6, %c0_7], %9 {strides = array<i32>} : memref<16x16xf32, #tpu.memory_space<vmem>>, vector<16x16xf32>,
    %cst_8 = arith.constant 0.000000e+00 : f32
    %11 = vector.broadcast %cst_8 : f32 to vector<1x16xf32>
    %c0_i32 = arith.constant 0 : i32
    %c16_i32 = arith.constant 16 : i32
    %12 = arith.addi %c0_i32, %c16_i32 : i32
    %c1_i32 = arith.constant 1 : i32
    %13:2 = scf.for %arg6 = %c0_i32 to %12 step %c1_i32 iter_args(%arg7 = %11, %arg8 = %11) -> (vector<1x16xf32>, vector<1x16xf32>)  : i32 {
      %61 = arith.index_cast %arg6 : i32 to index
      %c0_30 = arith.constant 0 : index
      %62 = vector.load %arg5[%61, %c0_30] : memref<16x16xf32, #tpu.memory_space<vmem>>, vector<1x16xf32>
      %63 = vector.broadcast %62 : vector<1x16xf32> to vector<16x16xf32>
      %64 = arith.cmpf oge, %9, %63 : vector<16x16xf32>
      %cst_31 = arith.constant 1.000000e+00 : f32
      %cst_32 = arith.constant 0.000000e+00 : f32
      %65 = vector.broadcast %cst_31 : f32 to vector<16x16xf32>
      %66 = vector.broadcast %cst_32 : f32 to vector<16x16xf32>
      %67 = arith.select %64, %65, %66 : vector<16x16xi1>, vector<16x16xf32>
      %cst_33 = arith.constant dense<0.000000e+00> : vector<16xf32>
      %68 = vector.multi_reduction <add>, %67, %cst_33 [0] : vector<16x16xf32> to vector<16xf32>
      %69 = vector.shape_cast %68 : vector<16xf32> to vector<1x16xf32>
      %cst_34 = arith.constant 0.000000e+00 : f32
      %70 = vector.broadcast %cst_34 : f32 to vector<16x16xf32>
      %71 = arith.select %64, %9, %70 : vector<16x16xi1>, vector<16x16xf32>
      %cst_35 = arith.constant dense<0.000000e+00> : vector<16xf32>
      %72 = vector.multi_reduction <add>, %71, %cst_35 [0] : vector<16x16xf32> to vector<16xf32>
      %73 = vector.shape_cast %72 : vector<16xf32> to vector<1x16xf32>
      %cst_36 = arith.constant -5.000000e+29 : f32
      %74 = vector.broadcast %cst_36 : f32 to vector<1x16xf32>
      %75 = arith.cmpf ogt, %62, %74 : vector<1x16xf32>
      %76 = arith.mulf %69, %62 : vector<1x16xf32>
      %cst_37 = arith.constant 1.000000e+00 : f32
      %77 = vector.broadcast %cst_37 : f32 to vector<1x16xf32>
      %78 = arith.addf %77, %76 : vector<1x16xf32>
      %79 = arith.cmpf ogt, %78, %73 : vector<1x16xf32>
      %80 = arith.andi %75, %79 : vector<1x16xi1>
      %cst_38 = arith.constant 1.000000e+00 : f32
      %cst_39 = arith.constant 0.000000e+00 : f32
      %81 = vector.broadcast %cst_38 : f32 to vector<1x16xf32>
      %82 = vector.broadcast %cst_39 : f32 to vector<1x16xf32>
      %83 = arith.select %80, %81, %82 : vector<1x16xi1>, vector<1x16xf32>
      %84 = arith.addf %arg7, %83 : vector<1x16xf32>
      %cst_40 = arith.constant 0.000000e+00 : f32
      %85 = vector.broadcast %cst_40 : f32 to vector<1x16xf32>
      %86 = arith.select %80, %62, %85 : vector<1x16xi1>, vector<1x16xf32>
      %87 = arith.addf %arg8, %86 : vector<1x16xf32>
      scf.yield %84, %87 : vector<1x16xf32>, vector<1x16xf32>
    }
    %c16_i32_9 = arith.constant 16 : i32
    %cst_10 = arith.constant 1.000000e+00 : f32
    %14 = vector.broadcast %cst_10 : f32 to vector<1x16xf32>
    %15 = arith.subf %13#1, %14 : vector<1x16xf32>
    %cst_11 = arith.constant 1.000000e+00 : f32
    %16 = vector.broadcast %cst_11 : f32 to vector<1x16xf32>
    %17 = arith.maximumf %13#0, %16 : vector<1x16xf32>
    %18 = arith.divf %15, %17 : vector<1x16xf32>
    %19 = vector.broadcast %18 : vector<1x16xf32> to vector<16x16xf32>
    %20 = arith.subf %9, %19 : vector<16x16xf32>
    %cst_12 = arith.constant 0.000000e+00 : f32
    %21 = vector.broadcast %cst_12 : f32 to vector<16x16xf32>
    %22 = arith.maximumf %20, %21 : vector<16x16xf32>
    %cst_13 = arith.constant -1.000000e+30 : f32
    %23 = vector.broadcast %cst_13 : f32 to vector<1x16xf32>
    %cst_14 = arith.constant dense<0xFF800000> : vector<16xf32>
    %24 = vector.multi_reduction <maximumf>, %22, %cst_14 [0] : vector<16x16xf32> to vector<16xf32>
    %25 = vector.shape_cast %24 : vector<16xf32> to vector<1x16xf32>
    %26 = vector.broadcast %25 : vector<1x16xf32> to vector<16x16xf32>
    %27 = arith.cmpf oge, %22, %26 : vector<16x16xf32>
    %cst_15 = arith.constant 1.000000e+00 : f32
    %cst_16 = arith.constant 0.000000e+00 : f32
    %28 = vector.broadcast %cst_15 : f32 to vector<16x16xf32>
    %29 = vector.broadcast %cst_16 : f32 to vector<16x16xf32>
    %30 = arith.select %27, %28, %29 : vector<16x16xi1>, vector<16x16xf32>
    %cst_17 = arith.constant dense<0.000000e+00> : vector<16xf32>
    %31 = vector.multi_reduction <add>, %30, %cst_17 [0] : vector<16x16xf32> to vector<16xf32>
    %32 = vector.shape_cast %31 : vector<16xf32> to vector<1x16xf32>
    %cst_18 = arith.constant 2.000000e+00 : f32
    %33 = vector.broadcast %cst_18 : f32 to vector<1x16xf32>
    %34 = arith.cmpf oge, %32, %33 : vector<1x16xf32>
    %cst_19 = arith.constant -1.000000e+30 : f32
    %35 = vector.broadcast %cst_19 : f32 to vector<1x16xf32>
    %36 = arith.select %34, %25, %35 : vector<1x16xi1>, vector<1x16xf32>
    %37 = arith.maximumf %23, %36 : vector<1x16xf32>
    %38 = vector.broadcast %25 : vector<1x16xf32> to vector<16x16xf32>
    %39 = arith.cmpf oge, %22, %38 : vector<16x16xf32>
    %cst_20 = arith.constant -1.000000e+30 : f32
    %40 = vector.broadcast %cst_20 : f32 to vector<16x16xf32>
    %41 = arith.select %39, %40, %22 : vector<16x16xi1>, vector<16x16xf32>
    %cst_21 = arith.constant dense<0xFF800000> : vector<16xf32>
    %42 = vector.multi_reduction <maximumf>, %41, %cst_21 [0] : vector<16x16xf32> to vector<16xf32>
    %43 = vector.shape_cast %42 : vector<16xf32> to vector<1x16xf32>
    %44 = vector.broadcast %43 : vector<1x16xf32> to vector<16x16xf32>
    %45 = arith.cmpf oge, %22, %44 : vector<16x16xf32>
    %cst_22 = arith.constant 1.000000e+00 : f32
    %cst_23 = arith.constant 0.000000e+00 : f32
    %46 = vector.broadcast %cst_22 : f32 to vector<16x16xf32>
    %47 = vector.broadcast %cst_23 : f32 to vector<16x16xf32>
    %48 = arith.select %45, %46, %47 : vector<16x16xi1>, vector<16x16xf32>
    %cst_24 = arith.constant dense<0.000000e+00> : vector<16xf32>
    %49 = vector.multi_reduction <add>, %48, %cst_24 [0] : vector<16x16xf32> to vector<16xf32>
    %50 = vector.shape_cast %49 : vector<16xf32> to vector<1x16xf32>
    %cst_25 = arith.constant 2.000000e+00 : f32
    %51 = vector.broadcast %cst_25 : f32 to vector<1x16xf32>
    %52 = arith.cmpf oge, %50, %51 : vector<1x16xf32>
    %cst_26 = arith.constant -1.000000e+30 : f32
    %53 = vector.broadcast %cst_26 : f32 to vector<1x16xf32>
    %54 = arith.select %52, %43, %53 : vector<1x16xi1>, vector<1x16xf32>
    %55 = arith.maximumf %37, %54 : vector<1x16xf32>
    %56 = vector.broadcast %55 : vector<1x16xf32> to vector<16x16xf32>
    %57 = arith.cmpf oge, %22, %56 : vector<16x16xf32>
    %cst_27 = arith.constant 0.000000e+00 : f32
    %58 = vector.broadcast %cst_27 : f32 to vector<16x16xf32>
    %59 = arith.select %57, %22, %58 : vector<16x16xi1>, vector<16x16xf32>
    %c0_28 = arith.constant 0 : index
    %c0_29 = arith.constant 0 : index
    %60 = vector.load %arg4[%c0_28, %c0_29] : memref<16x16xf32, #tpu.memory_space<vmem>>, vector<16x16xf32>
    tpu.vector_store %arg4[%c0_28, %c0_29], %59 {strides = array<i32>} : memref<16x16xf32, #tpu.memory_space<vmem>>, vector<16x16xf32>,
    return
  }
  func.func @transform_0(%arg0: i32) -> (i32, i32) {
    %c0_i32 = arith.constant 0 : i32
    %c0_i32_0 = arith.constant 0 : i32
    return %c0_i32, %arg0 : i32, i32
  }
  func.func @transform_1(%arg0: i32) -> (i32, i32) {
    %c0_i32 = arith.constant 0 : i32
    %c0_i32_0 = arith.constant 0 : i32
    %c0_i32_1 = arith.constant 0 : i32
    return %c0_i32, %c0_i32_0 : i32, i32
  }
  func.func @transform_2(%arg0: i32) -> (i32, i32) {
    %c0_i32 = arith.constant 0 : i32
    %c0_i32_0 = arith.constant 0 : i32
    return %c0_i32, %arg0 : i32, i32
  }
  func.func @transform_3(%arg0: i32) -> (i32, i32) {
    %c0_i32 = arith.constant 0 : i32
    %c0_i32_0 = arith.constant 0 : i32
    return %c0_i32, %arg0 : i32, i32
  }
}

module attributes {stable_mosaic.version = 11 : i64} {
  func.func @_gcn_deg_kernel(%arg0: i32, %arg1: memref<16x16xf32, #tpu.memory_space<vmem>>, %arg2: memref<16x1xf32, #tpu.memory_space<vmem>>) attributes {dimension_semantics = [#tpu.dimension_semantics<parallel>], iteration_bounds = array<i64: 1>, scalar_prefetch = 0 : i64, scratch_operands = 0 : i64, tpu.core_type = #tpu.core_type<tc>, window_params = [{transform_indices = @transform_0, window_bounds = array<i64: 16, 16>}, {transform_indices = @transform_1, window_bounds = array<i64: 16, 1>}]} {
    %c0 = arith.constant 0 : index
    %c0_0 = arith.constant 0 : index
    %0 = vector.load %arg1[%c0, %c0_0] : memref<16x16xf32, #tpu.memory_space<vmem>>, vector<16x16xf32>
    %c16_i32 = arith.constant 16 : i32
    %1 = arith.muli %arg0, %c16_i32 : i32
    %2 = tpu.iota {dimensions = array<i32: 0>} : vector<16x1xi32>
    %3 = vector.broadcast %1 : i32 to vector<16x1xi32>
    %4 = arith.addi %3, %2 : vector<16x1xi32>
    %5 = tpu.iota {dimensions = array<i32: 1>} : vector<1x16xi32>
    %6 = vector.broadcast %4 : vector<16x1xi32> to vector<16x16xi32>
    %7 = vector.broadcast %5 : vector<1x16xi32> to vector<16x16xi32>
    %8 = arith.cmpi eq, %6, %7 : vector<16x16xi32>
    %cst = arith.constant 0.000000e+00 : f32
    %9 = vector.broadcast %cst : f32 to vector<16x16xf32>
    %10 = arith.cmpf oeq, %0, %9 : vector<16x16xf32>
    %11 = arith.andi %8, %10 : vector<16x16xi1>
    %cst_1 = arith.constant 1.000000e+00 : f32
    %12 = vector.broadcast %cst_1 : f32 to vector<16x16xf32>
    %13 = arith.select %11, %12, %0 : vector<16x16xi1>, vector<16x16xf32>
    %cst_2 = arith.constant dense<0.000000e+00> : vector<16xf32>
    %14 = vector.multi_reduction <add>, %13, %cst_2 [1] : vector<16x16xf32> to vector<16xf32>
    %15 = vector.shape_cast %14 : vector<16xf32> to vector<16x1xf32>
    %cst_3 = arith.constant 0.000000e+00 : f32
    %16 = vector.broadcast %cst_3 : f32 to vector<16x1xf32>
    %17 = arith.cmpf ogt, %15, %16 : vector<16x1xf32>
    %18 = math.rsqrt %15 : vector<16x1xf32>
    %cst_4 = arith.constant 0.000000e+00 : f32
    %19 = vector.broadcast %cst_4 : f32 to vector<16x1xf32>
    %20 = arith.select %17, %18, %19 : vector<16x1xi1>, vector<16x1xf32>
    %c0_5 = arith.constant 0 : index
    %c0_6 = arith.constant 0 : index
    %21 = vector.load %arg2[%c0_5, %c0_6] : memref<16x1xf32, #tpu.memory_space<vmem>>, vector<16x1xf32>
    tpu.vector_store %arg2[%c0_5, %c0_6], %20 {strides = array<i32>} : memref<16x1xf32, #tpu.memory_space<vmem>>, vector<16x1xf32>,
    return
  }
  func.func @transform_0(%arg0: i32) -> (i32, i32) {
    %c0_i32 = arith.constant 0 : i32
    %c0_i32_0 = arith.constant 0 : i32
    return %arg0, %c0_i32 : i32, i32
  }
  func.func @transform_1(%arg0: i32) -> (i32, i32) {
    %c0_i32 = arith.constant 0 : i32
    %c0_i32_0 = arith.constant 0 : i32
    return %arg0, %c0_i32 : i32, i32
  }
}

module attributes {stable_mosaic.version = 11 : i64} {
  func.func @_linear_kernel(%arg0: i32, %arg1: memref<16x32xf32, #tpu.memory_space<vmem>>, %arg2: memref<32x128xf32, #tpu.memory_space<vmem>>, %arg3: memref<1x128xf32, #tpu.memory_space<vmem>>, %arg4: memref<16x128xf32, #tpu.memory_space<vmem>>) attributes {dimension_semantics = [#tpu.dimension_semantics<parallel>], iteration_bounds = array<i64: 1>, scalar_prefetch = 0 : i64, scratch_operands = 0 : i64, tpu.core_type = #tpu.core_type<tc>, window_params = [{transform_indices = @transform_0, window_bounds = array<i64: 16, 32>}, {pipeline_mode = #tpu.pipeline_mode<synchronous>, transform_indices = @transform_1, window_bounds = array<i64: 32, 128>}, {pipeline_mode = #tpu.pipeline_mode<synchronous>, transform_indices = @transform_2, window_bounds = array<i64: 1, 128>}, {transform_indices = @transform_3, window_bounds = array<i64: 16, 128>}]} {
    %c0 = arith.constant 0 : index
    %c0_0 = arith.constant 0 : index
    %0 = vector.load %arg1[%c0, %c0_0] : memref<16x32xf32, #tpu.memory_space<vmem>>, vector<16x32xf32>
    %c0_1 = arith.constant 0 : index
    %c0_2 = arith.constant 0 : index
    %1 = vector.load %arg2[%c0_1, %c0_2] : memref<32x128xf32, #tpu.memory_space<vmem>>, vector<32x128xf32>
    %cst = arith.constant dense<0.000000e+00> : vector<16x128xf32>
    %2 = tpu.matmul %0, %1, %cst {dimension_numbers = #tpu.dot_dimension_numbers<[1], [0], [0], [1], [0, 0, 1, 1], [], []>} : vector<16x32xf32>, vector<32x128xf32>, vector<16x128xf32> -> vector<16x128xf32>
    %c0_3 = arith.constant 0 : index
    %c0_4 = arith.constant 0 : index
    %3 = vector.load %arg3[%c0_3, %c0_4] : memref<1x128xf32, #tpu.memory_space<vmem>>, vector<1x128xf32>
    %4 = vector.broadcast %3 : vector<1x128xf32> to vector<16x128xf32>
    %5 = arith.addf %2, %4 : vector<16x128xf32>
    %c0_5 = arith.constant 0 : index
    %c0_6 = arith.constant 0 : index
    %6 = vector.load %arg4[%c0_5, %c0_6] : memref<16x128xf32, #tpu.memory_space<vmem>>, vector<16x128xf32>
    tpu.vector_store %arg4[%c0_5, %c0_6], %5 {strides = array<i32>} : memref<16x128xf32, #tpu.memory_space<vmem>>, vector<16x128xf32>,
    return
  }
  func.func @transform_0(%arg0: i32) -> (i32, i32) {
    %c0_i32 = arith.constant 0 : i32
    %c0_i32_0 = arith.constant 0 : i32
    return %arg0, %c0_i32 : i32, i32
  }
  func.func @transform_1(%arg0: i32) -> (i32, i32) {
    %c0_i32 = arith.constant 0 : i32
    %c0_i32_0 = arith.constant 0 : i32
    %c0_i32_1 = arith.constant 0 : i32
    return %c0_i32, %c0_i32_0 : i32, i32
  }
  func.func @transform_2(%arg0: i32) -> (i32, i32) {
    %c0_i32 = arith.constant 0 : i32
    %c0_i32_0 = arith.constant 0 : i32
    %c0_i32_1 = arith.constant 0 : i32
    return %c0_i32, %c0_i32_0 : i32, i32
  }
  func.func @transform_3(%arg0: i32) -> (i32, i32) {
    %c0_i32 = arith.constant 0 : i32
    %c0_i32_0 = arith.constant 0 : i32
    return %arg0, %c0_i32 : i32, i32
  }
}

module attributes {stable_mosaic.version = 11 : i64} {
  func.func @_gcn_agg_kernel(%arg0: i32, %arg1: memref<16x16xf32, #tpu.memory_space<vmem>>, %arg2: memref<16x1xf32, #tpu.memory_space<vmem>>, %arg3: memref<16x1xf32, #tpu.memory_space<vmem>>, %arg4: memref<16x32xf32, #tpu.memory_space<vmem>>, %arg5: memref<1x32xf32, #tpu.memory_space<vmem>>, %arg6: memref<16x32xf32, #tpu.memory_space<vmem>>) attributes {dimension_semantics = [#tpu.dimension_semantics<parallel>], iteration_bounds = array<i64: 1>, scalar_prefetch = 0 : i64, scratch_operands = 0 : i64, tpu.core_type = #tpu.core_type<tc>, window_params = [{transform_indices = @transform_0, window_bounds = array<i64: 16, 16>}, {pipeline_mode = #tpu.pipeline_mode<synchronous>, transform_indices = @transform_1, window_bounds = array<i64: 16, 1>}, {transform_indices = @transform_2, window_bounds = array<i64: 16, 1>}, {pipeline_mode = #tpu.pipeline_mode<synchronous>, transform_indices = @transform_3, window_bounds = array<i64: 16, 32>}, {pipeline_mode = #tpu.pipeline_mode<synchronous>, transform_indices = @transform_4, window_bounds = array<i64: 1, 32>}, {transform_indices = @transform_5, window_bounds = array<i64: 16, 32>}]} {
    %c0 = arith.constant 0 : index
    %c0_0 = arith.constant 0 : index
    %0 = vector.load %arg1[%c0, %c0_0] : memref<16x16xf32, #tpu.memory_space<vmem>>, vector<16x16xf32>
    %c16_i32 = arith.constant 16 : i32
    %1 = arith.muli %arg0, %c16_i32 : i32
    %2 = tpu.iota {dimensions = array<i32: 0>} : vector<16x1xi32>
    %3 = vector.broadcast %1 : i32 to vector<16x1xi32>
    %4 = arith.addi %3, %2 : vector<16x1xi32>
    %5 = tpu.iota {dimensions = array<i32: 1>} : vector<1x16xi32>
    %6 = vector.broadcast %4 : vector<16x1xi32> to vector<16x16xi32>
    %7 = vector.broadcast %5 : vector<1x16xi32> to vector<16x16xi32>
    %8 = arith.cmpi eq, %6, %7 : vector<16x16xi32>
    %cst = arith.constant 0.000000e+00 : f32
    %9 = vector.broadcast %cst : f32 to vector<16x16xf32>
    %10 = arith.cmpf oeq, %0, %9 : vector<16x16xf32>
    %11 = arith.andi %8, %10 : vector<16x16xi1>
    %cst_1 = arith.constant 1.000000e+00 : f32
    %12 = vector.broadcast %cst_1 : f32 to vector<16x16xf32>
    %13 = arith.select %11, %12, %0 : vector<16x16xi1>, vector<16x16xf32>
    %c0_2 = arith.constant 0 : index
    %c0_3 = arith.constant 0 : index
    %14 = vector.load %arg4[%c0_2, %c0_3] : memref<16x32xf32, #tpu.memory_space<vmem>>, vector<16x32xf32>
    %c0_4 = arith.constant 0 : index
    %c0_5 = arith.constant 0 : index
    %15 = vector.load %arg2[%c0_4, %c0_5] : memref<16x1xf32, #tpu.memory_space<vmem>>, vector<16x1xf32>
    %16 = vector.broadcast %15 : vector<16x1xf32> to vector<16x32xf32>
    %17 = arith.mulf %14, %16 : vector<16x32xf32>
    %cst_6 = arith.constant dense<0.000000e+00> : vector<16x32xf32>
    %18 = tpu.matmul %13, %17, %cst_6 {dimension_numbers = #tpu.dot_dimension_numbers<[1], [0], [0], [1], [0, 0, 1, 1], [], []>} : vector<16x16xf32>, vector<16x32xf32>, vector<16x32xf32> -> vector<16x32xf32>
    %c0_7 = arith.constant 0 : index
    %c0_8 = arith.constant 0 : index
    %19 = vector.load %arg3[%c0_7, %c0_8] : memref<16x1xf32, #tpu.memory_space<vmem>>, vector<16x1xf32>
    %20 = vector.broadcast %19 : vector<16x1xf32> to vector<16x32xf32>
    %21 = arith.mulf %20, %18 : vector<16x32xf32>
    %c0_9 = arith.constant 0 : index
    %c0_10 = arith.constant 0 : index
    %22 = vector.load %arg5[%c0_9, %c0_10] : memref<1x32xf32, #tpu.memory_space<vmem>>, vector<1x32xf32>
    %23 = vector.broadcast %22 : vector<1x32xf32> to vector<16x32xf32>
    %24 = arith.addf %21, %23 : vector<16x32xf32>
    %cst_11 = arith.constant 0.000000e+00 : f32
    %25 = vector.broadcast %cst_11 : f32 to vector<16x32xf32>
    %26 = arith.maximumf %24, %25 : vector<16x32xf32>
    %c0_12 = arith.constant 0 : index
    %c0_13 = arith.constant 0 : index
    %27 = vector.load %arg6[%c0_12, %c0_13] : memref<16x32xf32, #tpu.memory_space<vmem>>, vector<16x32xf32>
    tpu.vector_store %arg6[%c0_12, %c0_13], %26 {strides = array<i32>} : memref<16x32xf32, #tpu.memory_space<vmem>>, vector<16x32xf32>,
    return
  }
  func.func @transform_0(%arg0: i32) -> (i32, i32) {
    %c0_i32 = arith.constant 0 : i32
    %c0_i32_0 = arith.constant 0 : i32
    return %arg0, %c0_i32 : i32, i32
  }
  func.func @transform_1(%arg0: i32) -> (i32, i32) {
    %c0_i32 = arith.constant 0 : i32
    %c0_i32_0 = arith.constant 0 : i32
    %c0_i32_1 = arith.constant 0 : i32
    return %c0_i32, %c0_i32_0 : i32, i32
  }
  func.func @transform_2(%arg0: i32) -> (i32, i32) {
    %c0_i32 = arith.constant 0 : i32
    %c0_i32_0 = arith.constant 0 : i32
    return %arg0, %c0_i32 : i32, i32
  }
  func.func @transform_3(%arg0: i32) -> (i32, i32) {
    %c0_i32 = arith.constant 0 : i32
    %c0_i32_0 = arith.constant 0 : i32
    %c0_i32_1 = arith.constant 0 : i32
    return %c0_i32, %c0_i32_0 : i32, i32
  }
  func.func @transform_4(%arg0: i32) -> (i32, i32) {
    %c0_i32 = arith.constant 0 : i32
    %c0_i32_0 = arith.constant 0 : i32
    %c0_i32_1 = arith.constant 0 : i32
    return %c0_i32, %c0_i32_0 : i32, i32
  }
  func.func @transform_5(%arg0: i32) -> (i32, i32) {
    %c0_i32 = arith.constant 0 : i32
    %c0_i32_0 = arith.constant 0 : i32
    return %arg0, %c0_i32 : i32, i32
  }
}

module attributes {stable_mosaic.version = 11 : i64} {
  func.func @_pool_kernel(%arg0: memref<2x16xf32, #tpu.memory_space<vmem>>, %arg1: memref<16x32xf32, #tpu.memory_space<vmem>>, %arg2: memref<2x64xf32, #tpu.memory_space<vmem>>) attributes {dimension_semantics = [], scalar_prefetch = 0 : i64, scratch_operands = 0 : i64, tpu.core_type = #tpu.core_type<tc>} {
    %c0 = arith.constant 0 : index
    %c0_0 = arith.constant 0 : index
    %0 = vector.load %arg0[%c0, %c0_0] : memref<2x16xf32, #tpu.memory_space<vmem>>, vector<2x16xf32>
    %c0_1 = arith.constant 0 : index
    %c0_2 = arith.constant 0 : index
    %1 = vector.load %arg1[%c0_1, %c0_2] : memref<16x32xf32, #tpu.memory_space<vmem>>, vector<16x32xf32>
    %cst = arith.constant dense<0.000000e+00> : vector<2xf32>
    %2 = vector.multi_reduction <add>, %0, %cst [1] : vector<2x16xf32> to vector<2xf32>
    %3 = vector.shape_cast %2 : vector<2xf32> to vector<2x1xf32>
    %cst_3 = arith.constant dense<0.000000e+00> : vector<2x32xf32>
    %4 = tpu.matmul %0, %1, %cst_3 {dimension_numbers = #tpu.dot_dimension_numbers<[1], [0], [0], [1], [0, 0, 1, 1], [], []>} : vector<2x16xf32>, vector<16x32xf32>, vector<2x32xf32> -> vector<2x32xf32>
    %cst_4 = arith.constant 1.000000e+00 : f32
    %5 = vector.broadcast %cst_4 : f32 to vector<2x1xf32>
    %6 = arith.maximumf %3, %5 : vector<2x1xf32>
    %7 = vector.broadcast %6 : vector<2x1xf32> to vector<2x32xf32>
    %8 = arith.divf %4, %7 : vector<2x32xf32>
    %9 = tpu.transpose %0, [1, 0] : vector<2x16xf32> -> vector<16x2xf32>
    %10 = vector.extract_strided_slice %9 {offsets = [0, 0], sizes = [16, 1], strides = [1, 1]} : vector<16x2xf32> to vector<16x1xf32>
    %cst_5 = arith.constant 0.000000e+00 : f32
    %11 = vector.broadcast %cst_5 : f32 to vector<16x1xf32>
    %12 = arith.cmpf ogt, %10, %11 : vector<16x1xf32>
    %cst_6 = arith.constant -1.000000e+30 : f32
    %13 = vector.shape_cast %12 : vector<16x1xi1> to vector<16x1xi1>
    %14 = vector.broadcast %13 : vector<16x1xi1> to vector<16x32xi1>
    %15 = vector.broadcast %cst_6 : f32 to vector<16x32xf32>
    %16 = arith.select %14, %1, %15 : vector<16x32xi1>, vector<16x32xf32>
    %cst_7 = arith.constant dense<0xFF800000> : vector<32xf32>
    %17 = vector.multi_reduction <maximumf>, %16, %cst_7 [0] : vector<16x32xf32> to vector<32xf32>
    %18 = vector.shape_cast %17 : vector<32xf32> to vector<1x32xf32>
    %19 = vector.extract_strided_slice %9 {offsets = [0, 1], sizes = [16, 1], strides = [1, 1]} : vector<16x2xf32> to vector<16x1xf32>
    %cst_8 = arith.constant 0.000000e+00 : f32
    %20 = vector.broadcast %cst_8 : f32 to vector<16x1xf32>
    %21 = arith.cmpf ogt, %19, %20 : vector<16x1xf32>
    %cst_9 = arith.constant -1.000000e+30 : f32
    %22 = vector.shape_cast %21 : vector<16x1xi1> to vector<16x1xi1>
    %23 = vector.broadcast %22 : vector<16x1xi1> to vector<16x32xi1>
    %24 = vector.broadcast %cst_9 : f32 to vector<16x32xf32>
    %25 = arith.select %23, %1, %24 : vector<16x32xi1>, vector<16x32xf32>
    %cst_10 = arith.constant dense<0xFF800000> : vector<32xf32>
    %26 = vector.multi_reduction <maximumf>, %25, %cst_10 [0] : vector<16x32xf32> to vector<32xf32>
    %27 = vector.shape_cast %26 : vector<32xf32> to vector<1x32xf32>
    %28 = tpu.concatenate %18, %27 in 0 : vector<1x32xf32>, vector<1x32xf32> -> vector<2x32xf32>
    %c0_11 = arith.constant 0 : index
    %c0_12 = arith.constant 0 : index
    %29 = vector.load %arg2[%c0_11, %c0_12] : memref<2x64xf32, #tpu.memory_space<vmem>>, vector<2x32xf32>
    tpu.vector_store %arg2[%c0_11, %c0_12], %8 {strides = array<i32>} : memref<2x64xf32, #tpu.memory_space<vmem>>, vector<2x32xf32>,
    %c0_13 = arith.constant 0 : index
    %c32 = arith.constant 32 : index
    %30 = vector.load %arg2[%c0_13, %c32] : memref<2x64xf32, #tpu.memory_space<vmem>>, vector<2x32xf32>
    tpu.vector_store %arg2[%c0_13, %c32], %28 {strides = array<i32>} : memref<2x64xf32, #tpu.memory_space<vmem>>, vector<2x32xf32>,
    return
  }
}

module attributes {stable_mosaic.version = 11 : i64} {
  func.func @_linear_kernel(%arg0: i32, %arg1: memref<2x64xf32, #tpu.memory_space<vmem>>, %arg2: memref<64x128xf32, #tpu.memory_space<vmem>>, %arg3: memref<1x128xf32, #tpu.memory_space<vmem>>, %arg4: memref<2x128xf32, #tpu.memory_space<vmem>>) attributes {dimension_semantics = [#tpu.dimension_semantics<parallel>], iteration_bounds = array<i64: 1>, scalar_prefetch = 0 : i64, scratch_operands = 0 : i64, tpu.core_type = #tpu.core_type<tc>, window_params = [{transform_indices = @transform_0, window_bounds = array<i64: 2, 64>}, {pipeline_mode = #tpu.pipeline_mode<synchronous>, transform_indices = @transform_1, window_bounds = array<i64: 64, 128>}, {pipeline_mode = #tpu.pipeline_mode<synchronous>, transform_indices = @transform_2, window_bounds = array<i64: 1, 128>}, {transform_indices = @transform_3, window_bounds = array<i64: 2, 128>}]} {
    %c0 = arith.constant 0 : index
    %c0_0 = arith.constant 0 : index
    %0 = vector.load %arg1[%c0, %c0_0] : memref<2x64xf32, #tpu.memory_space<vmem>>, vector<2x64xf32>
    %c0_1 = arith.constant 0 : index
    %c0_2 = arith.constant 0 : index
    %1 = vector.load %arg2[%c0_1, %c0_2] : memref<64x128xf32, #tpu.memory_space<vmem>>, vector<64x128xf32>
    %cst = arith.constant dense<0.000000e+00> : vector<2x128xf32>
    %2 = tpu.matmul %0, %1, %cst {dimension_numbers = #tpu.dot_dimension_numbers<[1], [0], [0], [1], [0, 0, 1, 1], [], []>} : vector<2x64xf32>, vector<64x128xf32>, vector<2x128xf32> -> vector<2x128xf32>
    %c0_3 = arith.constant 0 : index
    %c0_4 = arith.constant 0 : index
    %3 = vector.load %arg3[%c0_3, %c0_4] : memref<1x128xf32, #tpu.memory_space<vmem>>, vector<1x128xf32>
    %4 = vector.broadcast %3 : vector<1x128xf32> to vector<2x128xf32>
    %5 = arith.addf %2, %4 : vector<2x128xf32>
    %cst_5 = arith.constant 0.000000e+00 : f32
    %6 = vector.broadcast %cst_5 : f32 to vector<2x128xf32>
    %7 = arith.maximumf %5, %6 : vector<2x128xf32>
    %c0_6 = arith.constant 0 : index
    %c0_7 = arith.constant 0 : index
    %8 = vector.load %arg4[%c0_6, %c0_7] : memref<2x128xf32, #tpu.memory_space<vmem>>, vector<2x128xf32>
    tpu.vector_store %arg4[%c0_6, %c0_7], %7 {strides = array<i32>} : memref<2x128xf32, #tpu.memory_space<vmem>>, vector<2x128xf32>,
    return
  }
  func.func @transform_0(%arg0: i32) -> (i32, i32) {
    %c0_i32 = arith.constant 0 : i32
    %c0_i32_0 = arith.constant 0 : i32
    return %arg0, %c0_i32 : i32, i32
  }
  func.func @transform_1(%arg0: i32) -> (i32, i32) {
    %c0_i32 = arith.constant 0 : i32
    %c0_i32_0 = arith.constant 0 : i32
    %c0_i32_1 = arith.constant 0 : i32
    return %c0_i32, %c0_i32_0 : i32, i32
  }
  func.func @transform_2(%arg0: i32) -> (i32, i32) {
    %c0_i32 = arith.constant 0 : i32
    %c0_i32_0 = arith.constant 0 : i32
    %c0_i32_1 = arith.constant 0 : i32
    return %c0_i32, %c0_i32_0 : i32, i32
  }
  func.func @transform_3(%arg0: i32) -> (i32, i32) {
    %c0_i32 = arith.constant 0 : i32
    %c0_i32_0 = arith.constant 0 : i32
    return %arg0, %c0_i32 : i32, i32
  }
}

module attributes {stable_mosaic.version = 11 : i64} {
  func.func @_linear_kernel(%arg0: i32, %arg1: memref<2x32xf32, #tpu.memory_space<vmem>>, %arg2: memref<32x128xf32, #tpu.memory_space<vmem>>, %arg3: memref<1x128xf32, #tpu.memory_space<vmem>>, %arg4: memref<2x128xf32, #tpu.memory_space<vmem>>) attributes {dimension_semantics = [#tpu.dimension_semantics<parallel>], iteration_bounds = array<i64: 1>, scalar_prefetch = 0 : i64, scratch_operands = 0 : i64, tpu.core_type = #tpu.core_type<tc>, window_params = [{transform_indices = @transform_0, window_bounds = array<i64: 2, 32>}, {pipeline_mode = #tpu.pipeline_mode<synchronous>, transform_indices = @transform_1, window_bounds = array<i64: 32, 128>}, {pipeline_mode = #tpu.pipeline_mode<synchronous>, transform_indices = @transform_2, window_bounds = array<i64: 1, 128>}, {transform_indices = @transform_3, window_bounds = array<i64: 2, 128>}]} {
    %c0 = arith.constant 0 : index
    %c0_0 = arith.constant 0 : index
    %0 = vector.load %arg1[%c0, %c0_0] : memref<2x32xf32, #tpu.memory_space<vmem>>, vector<2x32xf32>
    %c0_1 = arith.constant 0 : index
    %c0_2 = arith.constant 0 : index
    %1 = vector.load %arg2[%c0_1, %c0_2] : memref<32x128xf32, #tpu.memory_space<vmem>>, vector<32x128xf32>
    %cst = arith.constant dense<0.000000e+00> : vector<2x128xf32>
    %2 = tpu.matmul %0, %1, %cst {dimension_numbers = #tpu.dot_dimension_numbers<[1], [0], [0], [1], [0, 0, 1, 1], [], []>} : vector<2x32xf32>, vector<32x128xf32>, vector<2x128xf32> -> vector<2x128xf32>
    %c0_3 = arith.constant 0 : index
    %c0_4 = arith.constant 0 : index
    %3 = vector.load %arg3[%c0_3, %c0_4] : memref<1x128xf32, #tpu.memory_space<vmem>>, vector<1x128xf32>
    %4 = vector.broadcast %3 : vector<1x128xf32> to vector<2x128xf32>
    %5 = arith.addf %2, %4 : vector<2x128xf32>
    %c0_5 = arith.constant 0 : index
    %c0_6 = arith.constant 0 : index
    %6 = vector.load %arg4[%c0_5, %c0_6] : memref<2x128xf32, #tpu.memory_space<vmem>>, vector<2x128xf32>
    tpu.vector_store %arg4[%c0_5, %c0_6], %5 {strides = array<i32>} : memref<2x128xf32, #tpu.memory_space<vmem>>, vector<2x128xf32>,
    return
  }
  func.func @transform_0(%arg0: i32) -> (i32, i32) {
    %c0_i32 = arith.constant 0 : i32
    %c0_i32_0 = arith.constant 0 : i32
    return %arg0, %c0_i32 : i32, i32
  }
  func.func @transform_1(%arg0: i32) -> (i32, i32) {
    %c0_i32 = arith.constant 0 : i32
    %c0_i32_0 = arith.constant 0 : i32
    %c0_i32_1 = arith.constant 0 : i32
    return %c0_i32, %c0_i32_0 : i32, i32
  }
  func.func @transform_2(%arg0: i32) -> (i32, i32) {
    %c0_i32 = arith.constant 0 : i32
    %c0_i32_0 = arith.constant 0 : i32
    %c0_i32_1 = arith.constant 0 : i32
    return %c0_i32, %c0_i32_0 : i32, i32
  }
  func.func @transform_3(%arg0: i32) -> (i32, i32) {
    %c0_i32 = arith.constant 0 : i32
    %c0_i32_0 = arith.constant 0 : i32
    return %arg0, %c0_i32 : i32, i32
  }
}

</mosaic_0001>

<llo_original>
// kernel: gcnbb_forward.32
$region0: #{gcnbb_forward.32}
  #allocation0 [shape = 'u32[]', space=smem, size = 0x4, offset = 0x4, fixed_abs, tag = 'smem constant byte address 0x4 - core index']
  #allocation1 [shape = 'u32[144,128]{1,0:T(1,128)}', space=vmem, size = 0x12000, scoped, tag = 'internal scratch']
  %s0 = inlined_call_operand.vmem [shape: f32[16,8], index: 0, kind: input, shape index: {}]
  %s1 = inlined_call_operand.vmem [shape: f32[8,128], index: 1, kind: input, shape index: {}]
  %s2 = inlined_call_operand.vmem [shape: f32[1,128], index: 2, kind: input, shape index: {}]
  %s3 = inlined_call_operand.vmem [shape: f32[16,128], index: 3, kind: output, shape index: {}]
  %s4 = sld [smem:[#allocation0]]
  $region22: #{gcnbb_forward.32} parent=0
    _
  %s6 = ssub.s32 1, %s4
  %s7 = scalar_select 0, %s6, %s4
  // Predicated region
  $region2: #{gcnbb_forward.32} parent=0 // pred_check
    _
  $region3: #{gcnbb_forward.32} parent=0 // pred_check_branch
    %9 = sbr.rel (0) target = $region5
  $region4: #{gcnbb_forward.32} parent=0 // pred_region
    _
  $region5: #{gcnbb_forward.32} parent=0 // pred_fallthru
    _
  // Predicated region
  $region6: #{gcnbb_forward.32} parent=0 // pred_check
    _
  $region7: #{gcnbb_forward.32} parent=0 // pred_check_branch
    %11 = sbr.rel (0) target = $region9
  $region8: #{gcnbb_forward.32} parent=0 // pred_region
    _
  $region9: #{gcnbb_forward.32} parent=0 // pred_fallthru
    _
  // Predicated region
  $region10: #{gcnbb_forward.32} parent=0 // pred_check
    _
  $region11: #{gcnbb_forward.32} parent=0 // pred_check_branch
    %13 = sbr.rel (0) target = $region13
  $region12: #{gcnbb_forward.32} parent=0 // pred_region
    _
  $region13: #{gcnbb_forward.32} parent=0 // pred_fallthru
    _
  %v14 = vld [vmem:[%s0] sm:$0xff]
  %v15 = vld [vmem:[%s0 + $0x8] sm:$0xff]
  %v16 = vld [vmem:[%s1] sm:$0xff]
  %v17 = vld [vmem:[%s2] sm:$0x1]
  %v19 = vlaneseq
  %v20 = vshrl.u32 %v19, 7
  %v21 = vsub.s32 0, %v20
  %v22 = vrot.slane %v17, %v21
  %vm24 = vcmask 64512
  %v26 = vsel %vm24, %v14, 0
  %v29 = vsel %vm24, %v15, 0
  %31 = vmatprep.subr.mxu0 0.0
  %32 = vmatpush1.msra.mxu0 %v16
  %33 = vmatprep.subr.mxu0 0.0
  %34 = vmatpush1.msra.mxu0 0.0
  %35 = vmatprep.subr.mxu0 0.0
  %36 = vmatpush1.msra.mxu0 0.0
  %37 = vmatprep.subr.mxu0 0.0
  %38 = vmatpush1.msra.mxu0 0.0
  %39 = vmatprep.subr.mxu0 0.0
  %40 = vmatpush1.msra.mxu0 0.0
  %41 = vmatprep.subr.mxu0 0.0
  %42 = vmatpush1.msra.mxu0 0.0
  %43 = vmatprep.subr.mxu0 0.0
  %44 = vmatpush1.msra.mxu0 0.0
  %45 = vmatprep.subr.mxu0 0.0
  %46 = vmatpush1.msra.mxu0 0.0
  %47 = vmatprep.subr.mxu0 0.0
  %48 = vmatpush1.msra.mxu0 0.0
  %49 = vmatprep.subr.mxu0 0.0
  %50 = vmatpush1.msra.mxu0 0.0
  %51 = vmatprep.subr.mxu0 0.0
  %52 = vmatpush1.msra.mxu0 0.0
  %53 = vmatprep.subr.mxu0 0.0
  %54 = vmatpush1.msra.mxu0 0.0
  %55 = vmatprep.subr.mxu0 0.0
  %56 = vmatpush1.msra.mxu0 0.0
  %57 = vmatprep.subr.mxu0 0.0
  %58 = vmatpush1.msra.mxu0 0.0
  %59 = vmatprep.subr.mxu0 0.0
  %60 = vmatpush1.msra.mxu0 0.0
  %61 = vmatprep.subr.mxu0 0.0
  %62 = vmatpush1.msra.mxu0 0.0
  %63 = vmatprep.subr.mxu0 0.0
  %64 = vmatpush1.msra.mxu0 0.0
  %65 = vmatprep.subr.mxu0 0.0
  %66 = vmatpush1.msra.mxu0 0.0
  %67 = vmatprep.subr.mxu0 0.0
  %68 = vmatpush1.msra.mxu0 0.0
  %69 = vmatprep.subr.mxu0 0.0
  %70 = vmatpush1.msra.mxu0 0.0
  %71 = vmatprep.subr.mxu0 0.0
  %72 = vmatpush1.msra.mxu0 0.0
  %73 = vmatprep.subr.mxu0 0.0
  %74 = vmatpush1.msra.mxu0 0.0
  %75 = vmatprep.subr.mxu0 0.0
  %76 = vmatpush1.msra.mxu0 0.0
  %77 = vmatprep.subr.mxu0 0.0
  %78 = vmatpush1.msra.mxu0 0.0
  %79 = vmatprep.subr.mxu0 0.0
  %80 = vmatpush1.msra.mxu0 0.0
  %81 = vmatprep.subr.mxu0 0.0
  %82 = vmatpush1.msra.mxu0 0.0
  %83 = vmatprep.subr.mxu0 0.0
  %84 = vmatpush1.msra.mxu0 0.0
  %85 = vmatprep.subr.mxu0 0.0
  %86 = vmatpush1.msra.mxu0 0.0
  %87 = vmatprep.subr.mxu0 0.0
  %88 = vmatpush1.msra.mxu0 0.0
  %89 = vmatprep.subr.mxu0 0.0
  %90 = vmatpush1.msra.mxu0 0.0
  %91 = vmatprep.subr.mxu0 0.0
  %92 = vmatpush1.msra.mxu0 0.0
  %93 = vmatprep.subr.mxu0 0.0
  %94 = vmatpush1.msra.mxu0 0.0
  %95 = vmatprep.mubr.f32.mxu0 0.0
  %96 = vmatmul.mubr.f32.gmra.mrb[0].mxu0 %v26
  %v97 = vpop.f32.mrb[0].mxu0
  %v98 = vadd.f32 %v22, %v97
  %v99 = vpop.f32.mrb[0].mxu0
  %100 = vmatprep.mubr.f32.mxu0 0.0
  %101 = vmatmul.mubr.f32.gmra.mrb[0].mxu0 %v29
  %v102 = vpop.f32.mrb[0].mxu0
  %v103 = vadd.f32 %v22, %v102
  %v104 = vpop.f32.mrb[0].mxu0
  %105 = vdwg.mxu0
  %v106 = vmax.f32 %v98, 0.0
  %v107 = vmax.f32 %v103, 0.0
  %108 = vst [vmem:[%s3] sm:$0xff] %v106
  %109 = vst [vmem:[%s3 + $0x8] sm:$0xff] %v107
  // Predicated region
  $region14: #{gcnbb_forward.32} parent=0 // pred_check
    _
  $region15: #{gcnbb_forward.32} parent=0 // pred_check_branch
    %111 = sbr.rel (0) target = $region17
  $region16: #{gcnbb_forward.32} parent=0 // pred_region
    _
  $region17: #{gcnbb_forward.32} parent=0 // pred_fallthru
    _
  // Predicated region
  $region18: #{gcnbb_forward.32} parent=0 // pred_check
    _
  $region19: #{gcnbb_forward.32} parent=0 // pred_check_branch
    %113 = sbr.rel (0) target = $region21
  $region20: #{gcnbb_forward.32} parent=0 // pred_region
    _
  $region21: #{gcnbb_forward.32} parent=0 // pred_fallthru
    _

// kernel: gcnbb_forward.33
$region0: #{gcnbb_forward.33}
  #allocation0 [shape = 'u32[]', space=smem, size = 0x4, offset = 0x4, fixed_abs, tag = 'smem constant byte address 0x4 - core index']
  #allocation1 [shape = 'u32[144,128]{1,0:T(1,128)}', space=vmem, size = 0x12000, scoped, tag = 'internal scratch']
  #allocation2 [shape = 'f32[16,16]{1,0:T(8,128)}', space=vmem, size = 0x2000, scoped, tag = 'scratch operand']
  %s0 = inlined_call_operand.vmem [shape: f32[1,16], index: 0, kind: input, shape index: {}]
  %s1 = inlined_call_operand.vmem [shape: f32[16,1], index: 1, kind: input, shape index: {}]
  %s2 = inlined_call_operand.vmem [shape: bf16[16,16], index: 2, kind: input, shape index: {}]
  %s3 = inlined_call_operand.vmem [shape: f32[16,16], index: 3, kind: output, shape index: {}]
  %s4 = sld [smem:[#allocation0]]
  $region29: #{gcnbb_forward.33} parent=0
    _
  %s6 = ssub.s32 1, %s4
  %s7 = scalar_select 0, %s6, %s4
  // Predicated region
  $region2: #{gcnbb_forward.33} parent=0 // pred_check
    _
  $region3: #{gcnbb_forward.33} parent=0 // pred_check_branch
    %9 = sbr.rel (0) target = $region5
  $region4: #{gcnbb_forward.33} parent=0 // pred_region
    _
  $region5: #{gcnbb_forward.33} parent=0 // pred_fallthru
    _
  // Predicated region
  $region6: #{gcnbb_forward.33} parent=0 // pred_check
    _
  $region7: #{gcnbb_forward.33} parent=0 // pred_check_branch
    %11 = sbr.rel (0) target = $region9
  $region8: #{gcnbb_forward.33} parent=0 // pred_region
    _
  $region9: #{gcnbb_forward.33} parent=0 // pred_fallthru
    _
  // Predicated region
  $region10: #{gcnbb_forward.33} parent=0 // pred_check
    _
  $region11: #{gcnbb_forward.33} parent=0 // pred_check_branch
    %13 = sbr.rel (0) target = $region13
  $region12: #{gcnbb_forward.33} parent=0 // pred_region
    _
  $region13: #{gcnbb_forward.33} parent=0 // pred_fallthru
    _
  %v17 = vld [vmem:[%s2] sm:$0xf]
  %v18 = vld [vmem:[%s2 + $0x4] sm:$0xf]
  %vm19 = vcmp.gt.bf16.partialorder %v17, 0
  %vm20 = vcmp.gt.bf16.partialorder %v18, 0
  %v21 = vld [vmem:[%s0] sm:$0x1]
  %v22 = vld [vmem:[%s1] sm:$0xff]
  %v23 = vld [vmem:[%s1 + $0x8] sm:$0xff]
  %v25 = vlaneseq
  %v26 = vshrl.u32 %v25, 7
  %v27 = vsub.s32 0, %v26
  %v28 = vrot.slane %v21, %v27
  %31 = vset.pattern.permute.xlu0 0
  %32 = vperm.xlu0 %31, %v22
  %v33 = vpop.permute.xlu0 %32
  %36 = vset.pattern.permute.xlu0 0
  %37 = vperm.xlu0 %36, %v23
  %v38 = vpop.permute.xlu0 %37
  %v40 = vadd.f32 %v28, %v33
  %v41 = vadd.f32 %v28, %v38
  %v42 = vsel %vm19, 65537, 0
  %v43 = vsel %vm20, 65537, 0
  %v44 = vunpack.c.l.b16 %v42
  %v45 = vunpack.c.l.b16 %v43
  %vm46 = vcmp.ne.s32.totalorder %v44, 0
  %vm47 = vcmp.ne.s32.totalorder %v45, 0
  %v48 = vsel %vm46, %v40, -1e+30
  %v49 = vsel %vm47, %v41, -1e+30
  %vm50 = vcmask 130048
  %51 = vst.msk [vmem:[#allocation2] sm:$0xff] %vm50, %v48
  %52 = vst.msk [vmem:[#allocation2 + $0x8] sm:$0xff] %vm50, %v49
  loop: start=0, step=1, limit=16
  $region14: #{gcnbb_forward.33} parent=0 // loop_pre_header
    _
  $region15: #{gcnbb_forward.33} parent=0 // loop_header
    %s54 = sphi 0, %s58
    %p55 = scmp.ge.s32.totalorder %s54, 16
    %v59 = vphi 0.0, %v97
    %v60 = vphi 0.0, %v99
  $region16: #{gcnbb_forward.33} parent=0 // loop_header_branch
    %57 = sbr.rel (%p55) target = $region20
  $region17: #{gcnbb_forward.33} parent=0 // loop_body
    %s61 = scalar_lea.vmem [#allocation2], %s54
    %v62 = vld [vmem:[%s61] sm:$0x1]
    %v63 = vlaneseq
    %v64 = vshrl.u32 %v63, 7
    %v65 = vsub.s32 0, %v64
    %v66 = vrot.slane %v62, %v65
    %vm67 = vcmp.ge.f32.partialorder %v48, %v66
    %vm68 = vcmp.ge.f32.partialorder %v49, %v66
    %v69 = vsel %vm67, 1.0, 0.0
    %v70 = vsel %vm68, 1.0, 0.0
    %v71 = vsel %vm50, %v69, 0.0
    %v72 = vsel %vm50, %v70, 0.0
    %v73 = vadd.f32 %v71, %v72
    %v74 = vrot.slane %v73, 4
    %v75 = vadd.f32 %v73, %v74
    %v76 = vrot.slane %v75, 2
    %v77 = vadd.f32 %v75, %v76
    %v78 = vrot.slane %v77, 1
    %v79 = vadd.f32 %v77, %v78
    %v80 = vsel %vm67, %v48, 0.0
    %v81 = vsel %vm68, %v49, 0.0
    %v82 = vsel %vm50, %v80, 0.0
    %v83 = vsel %vm50, %v81, 0.0
    %v84 = vadd.f32 %v82, %v83
    %v85 = vrot.slane %v84, 4
    %v86 = vadd.f32 %v84, %v85
    %v87 = vrot.slane %v86, 2
    %v88 = vadd.f32 %v86, %v87
    %v89 = vrot.slane %v88, 1
    %v90 = vadd.f32 %v88, %v89
    %vm91 = vcmp.gt.f32.partialorder %v62, -5e+29
    %v92 = vmul.f32 %v79, %v62
    %v93 = vadd.f32 %v92, 1.0
    %vm94 = vcmp.gt.f32.partialorder %v93, %v90
    %vm95 = vmand %vm91, %vm94
    %v96 = vsel %vm95, 1.0, 0.0
    %v97 = vadd.f32 %v59, %v96
    %v98 = vsel %vm95, %v62, 0.0
    %v99 = vadd.f32 %v60, %v98
  $region18: #{gcnbb_forward.33} parent=0 // loop_footer
    %s58 = sadd.s32 1, %s54
  $region19: #{gcnbb_forward.33} parent=0 // loop_footer_branch
    %53 = sbr.rel target = $region15
  $region20: #{gcnbb_forward.33} parent=0 // loop_exit
    _
  %v100 = vsub.f32 %v60, 1.0
  %v101 = vmax.f32 %v59, 1.0
  %v102 = vrcp.pop %v101
  %v103 = vmul.f32 %v100, %v102
  %v104 = vlaneseq
  %v105 = vshrl.u32 %v104, 7
  %v106 = vsub.s32 0, %v105
  %v107 = vrot.slane %v103, %v106
  %v108 = vsub.f32 %v48, %v107
  %v109 = vsub.f32 %v49, %v107
  %v110 = vmax.f32 %v108, 0.0
  %v111 = vmax.f32 %v109, 0.0
  %v112 = vsel %vm50, %v110, -inf
  %v113 = vsel %vm50, %v111, -inf
  %v114 = vmax.f32 %v112, %v113
  %v115 = vrot.slane %v114, 4
  %v116 = vmax.f32 %v114, %v115
  %v117 = vrot.slane %v116, 2
  %v118 = vmax.f32 %v116, %v117
  %v119 = vrot.slane %v118, 1
  %v120 = vmax.f32 %v118, %v119
  %vm121 = vcmp.ge.f32.partialorder %v110, %v120
  %vm122 = vcmp.ge.f32.partialorder %v111, %v120
  %v123 = vsel %vm121, 1.0, 0.0
  %v124 = vsel %vm122, 1.0, 0.0
  %v125 = vsel %vm50, %v123, 0.0
  %v126 = vsel %vm50, %v124, 0.0
  %v127 = vadd.f32 %v125, %v126
  %v128 = vrot.slane %v127, 4
  %v129 = vadd.f32 %v127, %v128
  %v130 = vrot.slane %v129, 2
  %v131 = vadd.f32 %v129, %v130
  %v132 = vrot.slane %v131, 1
  %v133 = vadd.f32 %v131, %v132
  %vm134 = vcmp.ge.f32.partialorder %v133, 2.0
  %v135 = vsel %vm134, %v120, -1e+30
  %v136 = vmax.f32 %v135, -1e+30
  %v137 = vsel %vm121, -1e+30, %v110
  %v138 = vsel %vm122, -1e+30, %v111
  %v139 = vsel %vm50, %v137, -inf
  %v140 = vsel %vm50, %v138, -inf
  %v141 = vmax.f32 %v139, %v140
  %v142 = vrot.slane %v141, 4
  %v143 = vmax.f32 %v141, %v142
  %v144 = vrot.slane %v143, 2
  %v145 = vmax.f32 %v143, %v144
  %v146 = vrot.slane %v145, 1
  %v147 = vmax.f32 %v145, %v146
  %vm148 = vcmp.ge.f32.partialorder %v110, %v147
  %vm149 = vcmp.ge.f32.partialorder %v111, %v147
  %v150 = vsel %vm148, 1.0, 0.0
  %v151 = vsel %vm149, 1.0, 0.0
  %v152 = vsel %vm50, %v150, 0.0
  %v153 = vsel %vm50, %v151, 0.0
  %v154 = vadd.f32 %v152, %v153
  %v155 = vrot.slane %v154, 4
  %v156 = vadd.f32 %v154, %v155
  %v157 = vrot.slane %v156, 2
  %v158 = vadd.f32 %v156, %v157
  %v159 = vrot.slane %v158, 1
  %v160 = vadd.f32 %v158, %v159
  %vm161 = vcmp.ge.f32.partialorder %v160, 2.0
  %v162 = vsel %vm161, %v147, -1e+30
  %v163 = vmax.f32 %v136, %v162
  %vm164 = vcmp.ge.f32.partialorder %v110, %v163
  %vm165 = vcmp.ge.f32.partialorder %v111, %v163
  %v166 = vsel %vm164, %v110, 0.0
  %v167 = vsel %vm165, %v111, 0.0
  %168 = vst.msk [vmem:[%s3] sm:$0xff] %vm50, %v166
  %169 = vst.msk [vmem:[%s3 + $0x8] sm:$0xff] %vm50, %v167
  // Predicated region
  $region21: #{gcnbb_forward.33} parent=0 // pred_check
    _
  $region22: #{gcnbb_forward.33} parent=0 // pred_check_branch
    %171 = sbr.rel (0) target = $region24
  $region23: #{gcnbb_forward.33} parent=0 // pred_region
    _
  $region24: #{gcnbb_forward.33} parent=0 // pred_fallthru
    _
  // Predicated region
  $region25: #{gcnbb_forward.33} parent=0 // pred_check
    _
  $region26: #{gcnbb_forward.33} parent=0 // pred_check_branch
    %173 = sbr.rel (0) target = $region28
  $region27: #{gcnbb_forward.33} parent=0 // pred_region
    _
  $region28: #{gcnbb_forward.33} parent=0 // pred_fallthru
    _

// kernel: gcnbb_forward.34
$region0: #{gcnbb_forward.34}
  #allocation0 [shape = 'u32[]', space=smem, size = 0x4, offset = 0x4, fixed_abs, tag = 'smem constant byte address 0x4 - core index']
  #allocation1 [shape = 'u32[144,128]{1,0:T(1,128)}', space=vmem, size = 0x12000, scoped, tag = 'internal scratch']
  %s0 = inlined_call_operand.vmem [shape: f32[16,16], index: 0, kind: input, shape index: {}]
  %s1 = inlined_call_operand.vmem [shape: f32[16,1], index: 1, kind: output, shape index: {}]
  %s2 = sld [smem:[#allocation0]]
  $region14: #{gcnbb_forward.34} parent=0
    _
  %s4 = ssub.s32 1, %s2
  %s5 = scalar_select 0, %s4, %s2
  // Predicated region
  $region2: #{gcnbb_forward.34} parent=0 // pred_check
    _
  $region3: #{gcnbb_forward.34} parent=0 // pred_check_branch
    %7 = sbr.rel (0) target = $region5
  $region4: #{gcnbb_forward.34} parent=0 // pred_region
    _
  $region5: #{gcnbb_forward.34} parent=0 // pred_fallthru
    _
  %v8 = vld [vmem:[%s0] sm:$0xff]
  %v9 = vld [vmem:[%s0 + $0x8] sm:$0xff]
  %s10 = smul.u32 0, 16
  %v11 = vlaneseq
  %v12 = vshrl.u32 %v11, 7
  %v13 = vadd.s32 %v12, 8
  %v14 = vstv %s10
  %v15 = vadd.s32 %v14, %v12
  %v16 = vadd.s32 %v14, %v13
  %v17 = vlaneseq
  %v18 = vand.u32 %v17, 127
  %vm19 = vcmp.eq.s32.totalorder %v15, %v18
  %vm20 = vcmp.eq.s32.totalorder %v16, %v18
  %vm21 = vcmp.eq.f32.partialorder %v8, 0.0
  %vm22 = vcmp.eq.f32.partialorder %v9, 0.0
  %vm23 = vmand %vm19, %vm21
  %vm24 = vmand %vm20, %vm22
  %v25 = vsel %vm23, 1.0, %v8
  %v26 = vsel %vm24, 1.0, %v9
  %vm27 = vcmask 130048
  %v28 = vsel %vm27, %v25, 0.0
  %29 = vadd.xlane.f32.xlu0 %v28
  %v30 = vpop.xlane.xlu0 %29
  %v31 = vsel %vm27, %v26, 0.0
  %32 = vadd.xlane.f32.xlu0 %v31
  %v33 = vpop.xlane.xlu0 %32
  %vm34 = vcmp.gt.f32.partialorder %v30, 0.0
  %vm35 = vcmp.gt.f32.partialorder %v33, 0.0
  %v36 = vrsqrt.pop %v30
  %v37 = vrsqrt.pop %v33
  %v38 = vsel %vm34, %v36, 0.0
  %v39 = vsel %vm35, %v37, 0.0
  %vm40 = vcmask 7168
  %41 = vst.msk [vmem:[%s1] sm:$0xff] %vm40, %v38
  %42 = vst.msk [vmem:[%s1 + $0x8] sm:$0xff] %vm40, %v39
  // Predicated region
  $region6: #{gcnbb_forward.34} parent=0 // pred_check
    _
  $region7: #{gcnbb_forward.34} parent=0 // pred_check_branch
    %44 = sbr.rel (0) target = $region9
  $region8: #{gcnbb_forward.34} parent=0 // pred_region
    _
  $region9: #{gcnbb_forward.34} parent=0 // pred_fallthru
    _
  // Predicated region
  $region10: #{gcnbb_forward.34} parent=0 // pred_check
    _
  $region11: #{gcnbb_forward.34} parent=0 // pred_check_branch
    %46 = sbr.rel (0) target = $region13
  $region12: #{gcnbb_forward.34} parent=0 // pred_region
    _
  $region13: #{gcnbb_forward.34} parent=0 // pred_fallthru
    _

// kernel: gcnbb_forward.35
$region0: #{gcnbb_forward.35}
  #allocation0 [shape = 'u32[]', space=smem, size = 0x4, offset = 0x4, fixed_abs, tag = 'smem constant byte address 0x4 - core index']
  #allocation1 [shape = 'u32[144,128]{1,0:T(1,128)}', space=vmem, size = 0x12000, scoped, tag = 'internal scratch']
  %s0 = inlined_call_operand.vmem [shape: f32[16,32], index: 0, kind: input, shape index: {}]
  %s1 = inlined_call_operand.vmem [shape: f32[32,128], index: 1, kind: input, shape index: {}]
  %s2 = inlined_call_operand.vmem [shape: f32[1,128], index: 2, kind: input, shape index: {}]
  %s3 = inlined_call_operand.vmem [shape: f32[16,128], index: 3, kind: output, shape index: {}]
  %s4 = sld [smem:[#allocation0]]
  $region22: #{gcnbb_forward.35} parent=0
    _
  %s6 = ssub.s32 1, %s4
  %s7 = scalar_select 0, %s6, %s4
  // Predicated region
  $region2: #{gcnbb_forward.35} parent=0 // pred_check
    _
  $region3: #{gcnbb_forward.35} parent=0 // pred_check_branch
    %9 = sbr.rel (0) target = $region5
  $region4: #{gcnbb_forward.35} parent=0 // pred_region
    _
  $region5: #{gcnbb_forward.35} parent=0 // pred_fallthru
    _
  // Predicated region
  $region6: #{gcnbb_forward.35} parent=0 // pred_check
    _
  $region7: #{gcnbb_forward.35} parent=0 // pred_check_branch
    %11 = sbr.rel (0) target = $region9
  $region8: #{gcnbb_forward.35} parent=0 // pred_region
    _
  $region9: #{gcnbb_forward.35} parent=0 // pred_fallthru
    _
  // Predicated region
  $region10: #{gcnbb_forward.35} parent=0 // pred_check
    _
  $region11: #{gcnbb_forward.35} parent=0 // pred_check_branch
    %13 = sbr.rel (0) target = $region13
  $region12: #{gcnbb_forward.35} parent=0 // pred_region
    _
  $region13: #{gcnbb_forward.35} parent=0 // pred_fallthru
    _
  %v14 = vld [vmem:[%s0] sm:$0xff]
  %v15 = vld [vmem:[%s0 + $0x8] sm:$0xff]
  %v16 = vld [vmem:[%s1] sm:$0xff]
  %v17 = vld [vmem:[%s1 + $0x8] sm:$0xff]
  %v18 = vld [vmem:[%s1 + $0x10] sm:$0xff]
  %v19 = vld [vmem:[%s1 + $0x18] sm:$0xff]
  %v20 = vld [vmem:[%s2] sm:$0x1]
  %v22 = vlaneseq
  %v23 = vshrl.u32 %v22, 7
  %v24 = vsub.s32 0, %v23
  %v25 = vrot.slane %v20, %v24
  %vm27 = vcmask 261120
  %v29 = vsel %vm27, %v14, 0
  %v32 = vsel %vm27, %v15, 0
  %34 = vmatprep.subr.mxu0 0.0
  %35 = vmatpush1.msra.mxu0 %v16
  %36 = vmatprep.subr.mxu0 0.0
  %37 = vmatpush1.msra.mxu0 %v17
  %38 = vmatprep.subr.mxu0 0.0
  %39 = vmatpush1.msra.mxu0 %v18
  %40 = vmatprep.subr.mxu0 0.0
  %41 = vmatpush1.msra.mxu0 %v19
  %42 = vmatprep.subr.mxu0 0.0
  %43 = vmatpush1.msra.mxu0 0.0
  %44 = vmatprep.subr.mxu0 0.0
  %45 = vmatpush1.msra.mxu0 0.0
  %46 = vmatprep.subr.mxu0 0.0
  %47 = vmatpush1.msra.mxu0 0.0
  %48 = vmatprep.subr.mxu0 0.0
  %49 = vmatpush1.msra.mxu0 0.0
  %50 = vmatprep.subr.mxu0 0.0
  %51 = vmatpush1.msra.mxu0 0.0
  %52 = vmatprep.subr.mxu0 0.0
  %53 = vmatpush1.msra.mxu0 0.0
  %54 = vmatprep.subr.mxu0 0.0
  %55 = vmatpush1.msra.mxu0 0.0
  %56 = vmatprep.subr.mxu0 0.0
  %57 = vmatpush1.msra.mxu0 0.0
  %58 = vmatprep.subr.mxu0 0.0
  %59 = vmatpush1.msra.mxu0 0.0
  %60 = vmatprep.subr.mxu0 0.0
  %61 = vmatpush1.msra.mxu0 0.0
  %62 = vmatprep.subr.mxu0 0.0
  %63 = vmatpush1.msra.mxu0 0.0
  %64 = vmatprep.subr.mxu0 0.0
  %65 = vmatpush1.msra.mxu0 0.0
  %66 = vmatprep.subr.mxu0 0.0
  %67 = vmatpush1.msra.mxu0 0.0
  %68 = vmatprep.subr.mxu0 0.0
  %69 = vmatpush1.msra.mxu0 0.0
  %70 = vmatprep.subr.mxu0 0.0
  %71 = vmatpush1.msra.mxu0 0.0
  %72 = vmatprep.subr.mxu0 0.0
  %73 = vmatpush1.msra.mxu0 0.0
  %74 = vmatprep.subr.mxu0 0.0
  %75 = vmatpush1.msra.mxu0 0.0
  %76 = vmatprep.subr.mxu0 0.0
  %77 = vmatpush1.msra.mxu0 0.0
  %78 = vmatprep.subr.mxu0 0.0
  %79 = vmatpush1.msra.mxu0 0.0
  %80 = vmatprep.subr.mxu0 0.0
  %81 = vmatpush1.msra.mxu0 0.0
  %82 = vmatprep.subr.mxu0 0.0
  %83 = vmatpush1.msra.mxu0 0.0
  %84 = vmatprep.subr.mxu0 0.0
  %85 = vmatpush1.msra.mxu0 0.0
  %86 = vmatprep.subr.mxu0 0.0
  %87 = vmatpush1.msra.mxu0 0.0
  %88 = vmatprep.subr.mxu0 0.0
  %89 = vmatpush1.msra.mxu0 0.0
  %90 = vmatprep.subr.mxu0 0.0
  %91 = vmatpush1.msra.mxu0 0.0
  %92 = vmatprep.subr.mxu0 0.0
  %93 = vmatpush1.msra.mxu0 0.0
  %94 = vmatprep.subr.mxu0 0.0
  %95 = vmatpush1.msra.mxu0 0.0
  %96 = vmatprep.subr.mxu0 0.0
  %97 = vmatpush1.msra.mxu0 0.0
  %98 = vmatprep.mubr.f32.mxu0 0.0
  %99 = vmatmul.mubr.f32.gmra.mrb[0].mxu0 %v29
  %v100 = vpop.f32.mrb[0].mxu0
  %v101 = vadd.f32 %v25, %v100
  %v102 = vpop.f32.mrb[0].mxu0
  %103 = vmatprep.mubr.f32.mxu0 0.0
  %104 = vmatmul.mubr.f32.gmra.mrb[0].mxu0 %v32
  %v105 = vpop.f32.mrb[0].mxu0
  %v106 = vadd.f32 %v25, %v105
  %v107 = vpop.f32.mrb[0].mxu0
  %108 = vdwg.mxu0
  %109 = vst [vmem:[%s3] sm:$0xff] %v101
  %110 = vst [vmem:[%s3 + $0x8] sm:$0xff] %v106
  // Predicated region
  $region14: #{gcnbb_forward.35} parent=0 // pred_check
    _
  $region15: #{gcnbb_forward.35} parent=0 // pred_check_branch
    %112 = sbr.rel (0) target = $region17
  $region16: #{gcnbb_forward.35} parent=0 // pred_region
    _
  $region17: #{gcnbb_forward.35} parent=0 // pred_fallthru
    _
  // Predicated region
  $region18: #{gcnbb_forward.35} parent=0 // pred_check
    _
  $region19: #{gcnbb_forward.35} parent=0 // pred_check_branch
    %114 = sbr.rel (0) target = $region21
  $region20: #{gcnbb_forward.35} parent=0 // pred_region
    _
  $region21: #{gcnbb_forward.35} parent=0 // pred_fallthru
    _

// kernel: gcnbb_forward.36
$region0: #{gcnbb_forward.36}
  #allocation0 [shape = 'u32[]', space=smem, size = 0x4, offset = 0x4, fixed_abs, tag = 'smem constant byte address 0x4 - core index']
  #allocation1 [shape = 'u32[144,128]{1,0:T(1,128)}', space=vmem, size = 0x12000, scoped, tag = 'internal scratch']
  %s0 = inlined_call_operand.vmem [shape: f32[16,16], index: 0, kind: input, shape index: {}]
  %s1 = inlined_call_operand.vmem [shape: f32[16,1], index: 1, kind: input, shape index: {}, may-alias: {1,2}]
  %s2 = inlined_call_operand.vmem [shape: f32[16,1], index: 2, kind: input, shape index: {}, may-alias: {1,2}]
  %s3 = inlined_call_operand.vmem [shape: f32[16,32], index: 3, kind: input, shape index: {}]
  %s4 = inlined_call_operand.vmem [shape: f32[1,32], index: 4, kind: input, shape index: {}]
  %s5 = inlined_call_operand.vmem [shape: f32[16,32], index: 5, kind: output, shape index: {}]
  %s6 = sld [smem:[#allocation0]]
  $region30: #{gcnbb_forward.36} parent=0
    _
  %s8 = ssub.s32 1, %s6
  %s9 = scalar_select 0, %s8, %s6
  // Predicated region
  $region2: #{gcnbb_forward.36} parent=0 // pred_check
    _
  $region3: #{gcnbb_forward.36} parent=0 // pred_check_branch
    %11 = sbr.rel (0) target = $region5
  $region4: #{gcnbb_forward.36} parent=0 // pred_region
    _
  $region5: #{gcnbb_forward.36} parent=0 // pred_fallthru
    _
  // Predicated region
  $region6: #{gcnbb_forward.36} parent=0 // pred_check
    _
  $region7: #{gcnbb_forward.36} parent=0 // pred_check_branch
    %13 = sbr.rel (0) target = $region9
  $region8: #{gcnbb_forward.36} parent=0 // pred_region
    _
  $region9: #{gcnbb_forward.36} parent=0 // pred_fallthru
    _
  // Predicated region
  $region10: #{gcnbb_forward.36} parent=0 // pred_check
    _
  $region11: #{gcnbb_forward.36} parent=0 // pred_check_branch
    %15 = sbr.rel (0) target = $region13
  $region12: #{gcnbb_forward.36} parent=0 // pred_region
    _
  $region13: #{gcnbb_forward.36} parent=0 // pred_fallthru
    _
  // Predicated region
  $region14: #{gcnbb_forward.36} parent=0 // pred_check
    _
  $region15: #{gcnbb_forward.36} parent=0 // pred_check_branch
    %17 = sbr.rel (0) target = $region17
  $region16: #{gcnbb_forward.36} parent=0 // pred_region
    _
  $region17: #{gcnbb_forward.36} parent=0 // pred_fallthru
    _
  // Predicated region
  $region18: #{gcnbb_forward.36} parent=0 // pred_check
    _
  $region19: #{gcnbb_forward.36} parent=0 // pred_check_branch
    %19 = sbr.rel (0) target = $region21
  $region20: #{gcnbb_forward.36} parent=0 // pred_region
    _
  $region21: #{gcnbb_forward.36} parent=0 // pred_fallthru
    _
  %v20 = vld [vmem:[%s0] sm:$0xff]
  %v21 = vld [vmem:[%s0 + $0x8] sm:$0xff]
  %s22 = smul.u32 0, 16
  %v23 = vlaneseq
  %v24 = vshrl.u32 %v23, 7
  %v25 = vadd.s32 %v24, 8
  %v26 = vstv %s22
  %v27 = vadd.s32 %v26, %v24
  %v28 = vadd.s32 %v26, %v25
  %v29 = vlaneseq
  %v30 = vand.u32 %v29, 127
  %vm31 = vcmp.eq.s32.totalorder %v27, %v30
  %vm32 = vcmp.eq.s32.totalorder %v28, %v30
  %vm33 = vcmp.eq.f32.partialorder %v20, 0.0
  %vm34 = vcmp.eq.f32.partialorder %v21, 0.0
  %vm35 = vmand %vm31, %vm33
  %vm36 = vmand %vm32, %vm34
  %v37 = vsel %vm35, 1.0, %v20
  %v38 = vsel %vm36, 1.0, %v21
  %v39 = vld [vmem:[%s3] sm:$0xff]
  %v40 = vld [vmem:[%s3 + $0x8] sm:$0xff]
  %v41 = vld [vmem:[%s1] sm:$0xff]
  %v42 = vld [vmem:[%s1 + $0x8] sm:$0xff]
  %44 = vset.pattern.permute.xlu0 0
  %45 = vperm.xlu0 %44, %v41
  %v46 = vpop.permute.xlu0 %45
  %49 = vset.pattern.permute.xlu0 0
  %50 = vperm.xlu0 %49, %v42
  %v51 = vpop.permute.xlu0 %50
  %v53 = vmul.f32 %v39, %v46
  %v54 = vmul.f32 %v40, %v51
  %vm55 = vcmask 130048
  %v57 = vsel %vm55, %v37, 0
  %v60 = vsel %vm55, %v38, 0
  %62 = vmatprep.subr.mxu0 0.0
  %63 = vmatpush1.msra.mxu0 %v53
  %64 = vmatprep.subr.mxu0 0.0
  %65 = vmatpush1.msra.mxu0 %v54
  %66 = vmatprep.subr.mxu0 0.0
  %67 = vmatpush1.msra.mxu0 0.0
  %68 = vmatprep.subr.mxu0 0.0
  %69 = vmatpush1.msra.mxu0 0.0
  %70 = vmatprep.subr.mxu0 0.0
  %71 = vmatpush1.msra.mxu0 0.0
  %72 = vmatprep.subr.mxu0 0.0
  %73 = vmatpush1.msra.mxu0 0.0
  %74 = vmatprep.subr.mxu0 0.0
  %75 = vmatpush1.msra.mxu0 0.0
  %76 = vmatprep.subr.mxu0 0.0
  %77 = vmatpush1.msra.mxu0 0.0
  %78 = vmatprep.subr.mxu0 0.0
  %79 = vmatpush1.msra.mxu0 0.0
  %80 = vmatprep.subr.mxu0 0.0
  %81 = vmatpush1.msra.mxu0 0.0
  %82 = vmatprep.subr.mxu0 0.0
  %83 = vmatpush1.msra.mxu0 0.0
  %84 = vmatprep.subr.mxu0 0.0
  %85 = vmatpush1.msra.mxu0 0.0
  %86 = vmatprep.subr.mxu0 0.0
  %87 = vmatpush1.msra.mxu0 0.0
  %88 = vmatprep.subr.mxu0 0.0
  %89 = vmatpush1.msra.mxu0 0.0
  %90 = vmatprep.subr.mxu0 0.0
  %91 = vmatpush1.msra.mxu0 0.0
  %92 = vmatprep.subr.mxu0 0.0
  %93 = vmatpush1.msra.mxu0 0.0
  %94 = vmatprep.subr.mxu0 0.0
  %95 = vmatpush1.msra.mxu0 0.0
  %96 = vmatprep.subr.mxu0 0.0
  %97 = vmatpush1.msra.mxu0 0.0
  %98 = vmatprep.subr.mxu0 0.0
  %99 = vmatpush1.msra.mxu0 0.0
  %100 = vmatprep.subr.mxu0 0.0
  %101 = vmatpush1.msra.mxu0 0.0
  %102 = vmatprep.subr.mxu0 0.0
  %103 = vmatpush1.msra.mxu0 0.0
  %104 = vmatprep.subr.mxu0 0.0
  %105 = vmatpush1.msra.mxu0 0.0
  %106 = vmatprep.subr.mxu0 0.0
  %107 = vmatpush1.msra.mxu0 0.0
  %108 = vmatprep.subr.mxu0 0.0
  %109 = vmatpush1.msra.mxu0 0.0
  %110 = vmatprep.subr.mxu0 0.0
  %111 = vmatpush1.msra.mxu0 0.0
  %112 = vmatprep.subr.mxu0 0.0
  %113 = vmatpush1.msra.mxu0 0.0
  %114 = vmatprep.subr.mxu0 0.0
  %115 = vmatpush1.msra.mxu0 0.0
  %116 = vmatprep.subr.mxu0 0.0
  %117 = vmatpush1.msra.mxu0 0.0
  %118 = vmatprep.subr.mxu0 0.0
  %119 = vmatpush1.msra.mxu0 0.0
  %120 = vmatprep.subr.mxu0 0.0
  %121 = vmatpush1.msra.mxu0 0.0
  %122 = vmatprep.subr.mxu0 0.0
  %123 = vmatpush1.msra.mxu0 0.0
  %124 = vmatprep.subr.mxu0 0.0
  %125 = vmatpush1.msra.mxu0 0.0
  %126 = vmatprep.mubr.f32.mxu0 0.0
  %127 = vmatmul.mubr.f32.gmra.mrb[0].mxu0 %v57
  %v128 = vpop.f32.mrb[0].mxu0
  %v129 = vadd.f32 0.0, %v128
  %v130 = vpop.f32.mrb[0].mxu0
  %131 = vmatprep.mubr.f32.mxu0 0.0
  %132 = vmatmul.mubr.f32.gmra.mrb[0].mxu0 %v60
  %v133 = vpop.f32.mrb[0].mxu0
  %v134 = vadd.f32 0.0, %v133
  %v135 = vpop.f32.mrb[0].mxu0
  %136 = vdwg.mxu0
  %v137 = vld [vmem:[%s2] sm:$0xff]
  %v138 = vld [vmem:[%s2 + $0x8] sm:$0xff]
  %140 = vset.pattern.permute.xlu0 0
  %141 = vperm.xlu0 %140, %v137
  %v142 = vpop.permute.xlu0 %141
  %145 = vset.pattern.permute.xlu0 0
  %146 = vperm.xlu0 %145, %v138
  %v147 = vpop.permute.xlu0 %146
  %v149 = vmul.f32 %v142, %v129
  %v150 = vmul.f32 %v147, %v134
  %v151 = vld [vmem:[%s4] sm:$0x1]
  %v153 = vlaneseq
  %v154 = vshrl.u32 %v153, 7
  %v155 = vsub.s32 0, %v154
  %v156 = vrot.slane %v151, %v155
  %v158 = vadd.f32 %v149, %v156
  %v159 = vadd.f32 %v150, %v156
  %v160 = vmax.f32 %v158, 0.0
  %v161 = vmax.f32 %v159, 0.0
  %vm162 = vcmask 261120
  %163 = vst.msk [vmem:[%s5] sm:$0xff] %vm162, %v160
  %164 = vst.msk [vmem:[%s5 + $0x8] sm:$0xff] %vm162, %v161
  // Predicated region
  $region22: #{gcnbb_forward.36} parent=0 // pred_check
    _
  $region23: #{gcnbb_forward.36} parent=0 // pred_check_branch
    %166 = sbr.rel (0) target = $region25
  $region24: #{gcnbb_forward.36} parent=0 // pred_region
    _
  $region25: #{gcnbb_forward.36} parent=0 // pred_fallthru
    _
  // Predicated region
  $region26: #{gcnbb_forward.36} parent=0 // pred_check
    _
  $region27: #{gcnbb_forward.36} parent=0 // pred_check_branch
    %168 = sbr.rel (0) target = $region29
  $region28: #{gcnbb_forward.36} parent=0 // pred_region
    _
  $region29: #{gcnbb_forward.36} parent=0 // pred_fallthru
    _

// kernel: gcnbb_forward.39
$region0: #{gcnbb_forward.39}
  #allocation0 [shape = 'u32[]', space=smem, size = 0x4, offset = 0x4, fixed_abs, tag = 'smem constant byte address 0x4 - core index']
  #allocation1 [shape = 'u32[144,128]{1,0:T(1,128)}', space=vmem, size = 0x12000, scoped, tag = 'internal scratch']
  %s0 = inlined_call_operand.vmem [shape: f32[2,16], index: 0, kind: input, shape index: {}]
  %s1 = inlined_call_operand.vmem [shape: f32[16,32], index: 1, kind: input, shape index: {}]
  %s2 = inlined_call_operand.vmem [shape: f32[2,64], index: 2, kind: output, shape index: {}]
  %s3 = sld [smem:[#allocation0]]
  $region18: #{gcnbb_forward.39} parent=0
    _
  %s5 = ssub.s32 1, %s3
  %s6 = scalar_select 0, %s5, %s3
  // Predicated region
  $region2: #{gcnbb_forward.39} parent=0 // pred_check
    _
  $region3: #{gcnbb_forward.39} parent=0 // pred_check_branch
    %8 = sbr.rel (0) target = $region5
  $region4: #{gcnbb_forward.39} parent=0 // pred_region
    _
  $region5: #{gcnbb_forward.39} parent=0 // pred_fallthru
    _
  // Predicated region
  $region6: #{gcnbb_forward.39} parent=0 // pred_check
    _
  $region7: #{gcnbb_forward.39} parent=0 // pred_check_branch
    %10 = sbr.rel (0) target = $region9
  $region8: #{gcnbb_forward.39} parent=0 // pred_region
    _
  $region9: #{gcnbb_forward.39} parent=0 // pred_fallthru
    _
  %v11 = vld [vmem:[%s0] sm:$0x3]
  %v12 = vld [vmem:[%s1] sm:$0xff]
  %v13 = vld [vmem:[%s1 + $0x8] sm:$0xff]
  %vm14 = vcmask 123904
  %v15 = vsel %vm14, %v11, 0.0
  %16 = vadd.xlane.f32.xlu0 %v15
  %v17 = vpop.xlane.xlu0 %16
  %vm18 = vcmask 130048
  %v20 = vsel %vm18, %v11, 0
  %22 = vmatprep.subr.mxu0 0.0
  %23 = vmatpush1.msra.mxu0 %v12
  %24 = vmatprep.subr.mxu0 0.0
  %25 = vmatpush1.msra.mxu0 %v13
  %26 = vmatprep.subr.mxu0 0.0
  %27 = vmatpush1.msra.mxu0 0.0
  %28 = vmatprep.subr.mxu0 0.0
  %29 = vmatpush1.msra.mxu0 0.0
  %30 = vmatprep.subr.mxu0 0.0
  %31 = vmatpush1.msra.mxu0 0.0
  %32 = vmatprep.subr.mxu0 0.0
  %33 = vmatpush1.msra.mxu0 0.0
  %34 = vmatprep.subr.mxu0 0.0
  %35 = vmatpush1.msra.mxu0 0.0
  %36 = vmatprep.subr.mxu0 0.0
  %37 = vmatpush1.msra.mxu0 0.0
  %38 = vmatprep.subr.mxu0 0.0
  %39 = vmatpush1.msra.mxu0 0.0
  %40 = vmatprep.subr.mxu0 0.0
  %41 = vmatpush1.msra.mxu0 0.0
  %42 = vmatprep.subr.mxu0 0.0
  %43 = vmatpush1.msra.mxu0 0.0
  %44 = vmatprep.subr.mxu0 0.0
  %45 = vmatpush1.msra.mxu0 0.0
  %46 = vmatprep.subr.mxu0 0.0
  %47 = vmatpush1.msra.mxu0 0.0
  %48 = vmatprep.subr.mxu0 0.0
  %49 = vmatpush1.msra.mxu0 0.0
  %50 = vmatprep.subr.mxu0 0.0
  %51 = vmatpush1.msra.mxu0 0.0
  %52 = vmatprep.subr.mxu0 0.0
  %53 = vmatpush1.msra.mxu0 0.0
  %54 = vmatprep.subr.mxu0 0.0
  %55 = vmatpush1.msra.mxu0 0.0
  %56 = vmatprep.subr.mxu0 0.0
  %57 = vmatpush1.msra.mxu0 0.0
  %58 = vmatprep.subr.mxu0 0.0
  %59 = vmatpush1.msra.mxu0 0.0
  %60 = vmatprep.subr.mxu0 0.0
  %61 = vmatpush1.msra.mxu0 0.0
  %62 = vmatprep.subr.mxu0 0.0
  %63 = vmatpush1.msra.mxu0 0.0
  %64 = vmatprep.subr.mxu0 0.0
  %65 = vmatpush1.msra.mxu0 0.0
  %66 = vmatprep.subr.mxu0 0.0
  %67 = vmatpush1.msra.mxu0 0.0
  %68 = vmatprep.subr.mxu0 0.0
  %69 = vmatpush1.msra.mxu0 0.0
  %70 = vmatprep.subr.mxu0 0.0
  %71 = vmatpush1.msra.mxu0 0.0
  %72 = vmatprep.subr.mxu0 0.0
  %73 = vmatpush1.msra.mxu0 0.0
  %74 = vmatprep.subr.mxu0 0.0
  %75 = vmatpush1.msra.mxu0 0.0
  %76 = vmatprep.subr.mxu0 0.0
  %77 = vmatpush1.msra.mxu0 0.0
  %78 = vmatprep.subr.mxu0 0.0
  %79 = vmatpush1.msra.mxu0 0.0
  %80 = vmatprep.subr.mxu0 0.0
  %81 = vmatpush1.msra.mxu0 0.0
  %82 = vmatprep.subr.mxu0 0.0
  %83 = vmatpush1.msra.mxu0 0.0
  %84 = vmatprep.subr.mxu0 0.0
  %85 = vmatpush1.msra.mxu0 0.0
  %86 = vmatprep.mubr.f32.mxu0 0.0
  %87 = vmatmul.mubr.f32.gmra.mrb[0].mxu0 %v20
  %v88 = vpop.f32.mrb[0].mxu0
  %v89 = vadd.f32 0.0, %v88
  %v90 = vpop.f32.mrb[0].mxu0
  %91 = vdwg.mxu0
  %v92 = vmax.f32 %v17, 1.0
  %v93 = vrcp.pop %v92
  %v94 = vmul.f32 %v89, %v93
  %95 = vxpose.xlu0.b32.start [1/16] %v11, 128
  %96 = vxpose.xlu0.b32.cont [2/16] 0.0, 128
  %97 = vxpose.xlu0.b32.cont [3/16] 0.0, 128
  %98 = vxpose.xlu0.b32.cont [4/16] 0.0, 128
  %99 = vxpose.xlu0.b32.cont [5/16] 0.0, 128
  %100 = vxpose.xlu0.b32.cont [6/16] 0.0, 128
  %101 = vxpose.xlu0.b32.cont [7/16] 0.0, 128
  %102 = vxpose.xlu0.b32.cont [8/16] 0.0, 128
  %103 = vxpose.xlu0.b32.cont [9/16] 0.0, 128
  %104 = vxpose.xlu0.b32.cont [10/16] 0.0, 128
  %105 = vxpose.xlu0.b32.cont [11/16] 0.0, 128
  %106 = vxpose.xlu0.b32.cont [12/16] 0.0, 128
  %107 = vxpose.xlu0.b32.cont [13/16] 0.0, 128
  %108 = vxpose.xlu0.b32.cont [14/16] 0.0, 128
  %109 = vxpose.xlu0.b32.cont [15/16] 0.0, 128
  %110 = vxpose.xlu0.b32.end [16/16] 0.0, 128
  %v111 = vpop.trf.xlu0
  %v112 = vpop.trf.xlu0
  %v113 = vpop.trf.xlu0
  %v114 = vpop.trf.xlu0
  %v115 = vpop.trf.xlu0
  %v116 = vpop.trf.xlu0
  %v117 = vpop.trf.xlu0
  %v118 = vpop.trf.xlu0
  %v119 = vpop.trf.xlu0
  %v120 = vpop.trf.xlu0
  %v121 = vpop.trf.xlu0
  %v122 = vpop.trf.xlu0
  %v123 = vpop.trf.xlu0
  %v124 = vpop.trf.xlu0
  %v125 = vpop.trf.xlu0
  %v126 = vpop.trf.xlu0
  %vm127 = vcmp.gt.f32.partialorder %v111, 0.0
  %vm128 = vcmp.gt.f32.partialorder %v112, 0.0
  %v129 = vsel %vm127, 1, 0
  %v130 = vsel %vm128, 1, 0
  %131 = vset.pattern.permute.xlu0 0
  %132 = vperm.xlu0 %131, %v129
  %v133 = vpop.permute.xlu0 %132
  %134 = vset.pattern.permute.xlu0 0
  %135 = vperm.xlu0 %134, %v130
  %v136 = vpop.permute.xlu0 %135
  %vm137 = vcmp.eq.s32.totalorder %v133, 1
  %vm138 = vcmp.eq.s32.totalorder %v136, 1
  %v139 = vsel %vm137, %v12, -1e+30
  %v140 = vsel %vm138, %v13, -1e+30
  %vm141 = vcmask 261120
  %v142 = vsel %vm141, %v139, -inf
  %v143 = vsel %vm141, %v140, -inf
  %v144 = vmax.f32 %v142, %v143
  %v145 = vrot.slane %v144, 4
  %v146 = vmax.f32 %v144, %v145
  %v147 = vrot.slane %v146, 2
  %v148 = vmax.f32 %v146, %v147
  %v149 = vrot.slane %v148, 1
  %v150 = vmax.f32 %v148, %v149
  %151 = vset.pattern.permute.xlu0 1
  %152 = vperm.xlu0 %151, %v129
  %v153 = vpop.permute.xlu0 %152
  %154 = vset.pattern.permute.xlu0 1
  %155 = vperm.xlu0 %154, %v130
  %v156 = vpop.permute.xlu0 %155
  %vm157 = vcmp.eq.s32.totalorder %v153, 1
  %vm158 = vcmp.eq.s32.totalorder %v156, 1
  %v159 = vsel %vm157, %v12, -1e+30
  %v160 = vsel %vm158, %v13, -1e+30
  %v161 = vsel %vm141, %v159, -inf
  %v162 = vsel %vm141, %v160, -inf
  %v163 = vmax.f32 %v161, %v162
  %v164 = vrot.slane %v163, 4
  %v165 = vmax.f32 %v163, %v164
  %v166 = vrot.slane %v165, 2
  %v167 = vmax.f32 %v165, %v166
  %v168 = vrot.slane %v167, 1
  %v169 = vmax.f32 %v167, %v168
  %vm170 = vcmask 1040384
  %v171 = vsel %vm170, %v150, %v169
  %vm172 = vcmask 254976
  %173 = vst.msk [vmem:[%s2] sm:$0x3] %vm172, %v94
  %175 = vrot.lane.b32.xlu0 %v171, 32
  %v176 = vpop.permute.xlu0 %175
  %vm178 = vcmask 517376
  %179 = vst.msk [vmem:[%s2] sm:$0x3] %vm178, %v176
  // Predicated region
  $region10: #{gcnbb_forward.39} parent=0 // pred_check
    _
  $region11: #{gcnbb_forward.39} parent=0 // pred_check_branch
    %181 = sbr.rel (0) target = $region13
  $region12: #{gcnbb_forward.39} parent=0 // pred_region
    _
  $region13: #{gcnbb_forward.39} parent=0 // pred_fallthru
    _
  // Predicated region
  $region14: #{gcnbb_forward.39} parent=0 // pred_check
    _
  $region15: #{gcnbb_forward.39} parent=0 // pred_check_branch
    %183 = sbr.rel (0) target = $region17
  $region16: #{gcnbb_forward.39} parent=0 // pred_region
    _
  $region17: #{gcnbb_forward.39} parent=0 // pred_fallthru
    _

// kernel: gcnbb_forward.40
$region0: #{gcnbb_forward.40}
  #allocation0 [shape = 'u32[]', space=smem, size = 0x4, offset = 0x4, fixed_abs, tag = 'smem constant byte address 0x4 - core index']
  #allocation1 [shape = 'u32[144,128]{1,0:T(1,128)}', space=vmem, size = 0x12000, scoped, tag = 'internal scratch']
  %s0 = inlined_call_operand.vmem [shape: f32[2,64], index: 0, kind: input, shape index: {}]
  %s1 = inlined_call_operand.vmem [shape: f32[64,128], index: 1, kind: input, shape index: {}]
  %s2 = inlined_call_operand.vmem [shape: f32[1,128], index: 2, kind: input, shape index: {}]
  %s3 = inlined_call_operand.vmem [shape: f32[2,128], index: 3, kind: output, shape index: {}]
  %s4 = sld [smem:[#allocation0]]
  $region22: #{gcnbb_forward.40} parent=0
    _
  %s6 = ssub.s32 1, %s4
  %s7 = scalar_select 0, %s6, %s4
  // Predicated region
  $region2: #{gcnbb_forward.40} parent=0 // pred_check
    _
  $region3: #{gcnbb_forward.40} parent=0 // pred_check_branch
    %9 = sbr.rel (0) target = $region5
  $region4: #{gcnbb_forward.40} parent=0 // pred_region
    _
  $region5: #{gcnbb_forward.40} parent=0 // pred_fallthru
    _
  // Predicated region
  $region6: #{gcnbb_forward.40} parent=0 // pred_check
    _
  $region7: #{gcnbb_forward.40} parent=0 // pred_check_branch
    %11 = sbr.rel (0) target = $region9
  $region8: #{gcnbb_forward.40} parent=0 // pred_region
    _
  $region9: #{gcnbb_forward.40} parent=0 // pred_fallthru
    _
  // Predicated region
  $region10: #{gcnbb_forward.40} parent=0 // pred_check
    _
  $region11: #{gcnbb_forward.40} parent=0 // pred_check_branch
    %13 = sbr.rel (0) target = $region13
  $region12: #{gcnbb_forward.40} parent=0 // pred_region
    _
  $region13: #{gcnbb_forward.40} parent=0 // pred_fallthru
    _
  %v14 = vld [vmem:[%s0] sm:$0x3]
  %v15 = vld [vmem:[%s1] sm:$0xff]
  %v16 = vld [vmem:[%s1 + $0x8] sm:$0xff]
  %v17 = vld [vmem:[%s1 + $0x10] sm:$0xff]
  %v18 = vld [vmem:[%s1 + $0x18] sm:$0xff]
  %v19 = vld [vmem:[%s1 + $0x20] sm:$0xff]
  %v20 = vld [vmem:[%s1 + $0x28] sm:$0xff]
  %v21 = vld [vmem:[%s1 + $0x30] sm:$0xff]
  %v22 = vld [vmem:[%s1 + $0x38] sm:$0xff]
  %v23 = vld [vmem:[%s2] sm:$0x1]
  %v25 = vlaneseq
  %v26 = vshrl.u32 %v25, 7
  %v27 = vsub.s32 0, %v26
  %v28 = vrot.slane %v23, %v27
  %vm30 = vcmask 523264
  %v32 = vsel %vm30, %v14, 0
  %34 = vmatprep.subr.mxu0 0.0
  %35 = vmatpush1.msra.mxu0 %v15
  %36 = vmatprep.subr.mxu0 0.0
  %37 = vmatpush1.msra.mxu0 %v16
  %38 = vmatprep.subr.mxu0 0.0
  %39 = vmatpush1.msra.mxu0 %v17
  %40 = vmatprep.subr.mxu0 0.0
  %41 = vmatpush1.msra.mxu0 %v18
  %42 = vmatprep.subr.mxu0 0.0
  %43 = vmatpush1.msra.mxu0 %v19
  %44 = vmatprep.subr.mxu0 0.0
  %45 = vmatpush1.msra.mxu0 %v20
  %46 = vmatprep.subr.mxu0 0.0
  %47 = vmatpush1.msra.mxu0 %v21
  %48 = vmatprep.subr.mxu0 0.0
  %49 = vmatpush1.msra.mxu0 %v22
  %50 = vmatprep.subr.mxu0 0.0
  %51 = vmatpush1.msra.mxu0 0.0
  %52 = vmatprep.subr.mxu0 0.0
  %53 = vmatpush1.msra.mxu0 0.0
  %54 = vmatprep.subr.mxu0 0.0
  %55 = vmatpush1.msra.mxu0 0.0
  %56 = vmatprep.subr.mxu0 0.0
  %57 = vmatpush1.msra.mxu0 0.0
  %58 = vmatprep.subr.mxu0 0.0
  %59 = vmatpush1.msra.mxu0 0.0
  %60 = vmatprep.subr.mxu0 0.0
  %61 = vmatpush1.msra.mxu0 0.0
  %62 = vmatprep.subr.mxu0 0.0
  %63 = vmatpush1.msra.mxu0 0.0
  %64 = vmatprep.subr.mxu0 0.0
  %65 = vmatpush1.msra.mxu0 0.0
  %66 = vmatprep.subr.mxu0 0.0
  %67 = vmatpush1.msra.mxu0 0.0
  %68 = vmatprep.subr.mxu0 0.0
  %69 = vmatpush1.msra.mxu0 0.0
  %70 = vmatprep.subr.mxu0 0.0
  %71 = vmatpush1.msra.mxu0 0.0
  %72 = vmatprep.subr.mxu0 0.0
  %73 = vmatpush1.msra.mxu0 0.0
  %74 = vmatprep.subr.mxu0 0.0
  %75 = vmatpush1.msra.mxu0 0.0
  %76 = vmatprep.subr.mxu0 0.0
  %77 = vmatpush1.msra.mxu0 0.0
  %78 = vmatprep.subr.mxu0 0.0
  %79 = vmatpush1.msra.mxu0 0.0
  %80 = vmatprep.subr.mxu0 0.0
  %81 = vmatpush1.msra.mxu0 0.0
  %82 = vmatprep.subr.mxu0 0.0
  %83 = vmatpush1.msra.mxu0 0.0
  %84 = vmatprep.subr.mxu0 0.0
  %85 = vmatpush1.msra.mxu0 0.0
  %86 = vmatprep.subr.mxu0 0.0
  %87 = vmatpush1.msra.mxu0 0.0
  %88 = vmatprep.subr.mxu0 0.0
  %89 = vmatpush1.msra.mxu0 0.0
  %90 = vmatprep.subr.mxu0 0.0
  %91 = vmatpush1.msra.mxu0 0.0
  %92 = vmatprep.subr.mxu0 0.0
  %93 = vmatpush1.msra.mxu0 0.0
  %94 = vmatprep.subr.mxu0 0.0
  %95 = vmatpush1.msra.mxu0 0.0
  %96 = vmatprep.subr.mxu0 0.0
  %97 = vmatpush1.msra.mxu0 0.0
  %98 = vmatprep.mubr.f32.mxu0 0.0
  %99 = vmatmul.mubr.f32.gmra.mrb[0].mxu0 %v32
  %v100 = vpop.f32.mrb[0].mxu0
  %v101 = vadd.f32 %v28, %v100
  %v102 = vpop.f32.mrb[0].mxu0
  %103 = vdwg.mxu0
  %v104 = vmax.f32 %v101, 0.0
  %105 = vst [vmem:[%s3] sm:$0x3] %v104
  // Predicated region
  $region14: #{gcnbb_forward.40} parent=0 // pred_check
    _
  $region15: #{gcnbb_forward.40} parent=0 // pred_check_branch
    %107 = sbr.rel (0) target = $region17
  $region16: #{gcnbb_forward.40} parent=0 // pred_region
    _
  $region17: #{gcnbb_forward.40} parent=0 // pred_fallthru
    _
  // Predicated region
  $region18: #{gcnbb_forward.40} parent=0 // pred_check
    _
  $region19: #{gcnbb_forward.40} parent=0 // pred_check_branch
    %109 = sbr.rel (0) target = $region21
  $region20: #{gcnbb_forward.40} parent=0 // pred_region
    _
  $region21: #{gcnbb_forward.40} parent=0 // pred_fallthru
    _

// kernel: gcnbb_forward.43
$region0: #{gcnbb_forward.43}
  #allocation0 [shape = 'u32[]', space=smem, size = 0x4, offset = 0x4, fixed_abs, tag = 'smem constant byte address 0x4 - core index']
  #allocation1 [shape = 'u32[144,128]{1,0:T(1,128)}', space=vmem, size = 0x12000, scoped, tag = 'internal scratch']
  %s0 = inlined_call_operand.vmem [shape: f32[2,32], index: 0, kind: input, shape index: {}]
  %s1 = inlined_call_operand.vmem [shape: f32[32,128], index: 1, kind: input, shape index: {}]
  %s2 = inlined_call_operand.vmem [shape: f32[1,128], index: 2, kind: input, shape index: {}]
  %s3 = inlined_call_operand.hbm [shape: f32[2,128], index: 3, kind: output, shape index: {}]
  %s4 = sld [smem:[#allocation0]]
  $region22: #{gcnbb_forward.43} parent=0
    _
  %s6 = ssub.s32 1, %s4
  %s7 = scalar_select 0, %s6, %s4
  $region1: #{gcnbb_forward.43} parent=0
    #allocation2 [shape = 'u8[1024]{0}', space=vmem, size = 0x400, scoped, tag = 'output window, operand 0, single buffered']
    #allocation3 [shape = 's32[1]{0}', space=sflag, size = 0x4, scoped, tag = 'scoped memory for gcnbb_forward.43']
    %8 = vsyncpa [#allocation3], 0
    // Predicated region
    $region2: #{gcnbb_forward.43} parent=1 // pred_check
      _
    $region3: #{gcnbb_forward.43} parent=1 // pred_check_branch
      %10 = sbr.rel (0) target = $region5
    $region4: #{gcnbb_forward.43} parent=1 // pred_region
      _
    $region5: #{gcnbb_forward.43} parent=1 // pred_fallthru
      _
    // Predicated region
    $region6: #{gcnbb_forward.43} parent=1 // pred_check
      _
    $region7: #{gcnbb_forward.43} parent=1 // pred_check_branch
      %12 = sbr.rel (0) target = $region9
    $region8: #{gcnbb_forward.43} parent=1 // pred_region
      _
    $region9: #{gcnbb_forward.43} parent=1 // pred_fallthru
      _
    // Predicated region
    $region10: #{gcnbb_forward.43} parent=1 // pred_check
      _
    $region11: #{gcnbb_forward.43} parent=1 // pred_check_branch
      %14 = sbr.rel (0) target = $region13
    $region12: #{gcnbb_forward.43} parent=1 // pred_region
      _
    $region13: #{gcnbb_forward.43} parent=1 // pred_fallthru
      _
    %v15 = vld [vmem:[%s0] sm:$0x3]
    %v16 = vld [vmem:[%s1] sm:$0xff]
    %v17 = vld [vmem:[%s1 + $0x8] sm:$0xff]
    %v18 = vld [vmem:[%s1 + $0x10] sm:$0xff]
    %v19 = vld [vmem:[%s1 + $0x18] sm:$0xff]
    %v20 = vld [vmem:[%s2] sm:$0x1]
    %v22 = vlaneseq
    %v23 = vshrl.u32 %v22, 7
    %v24 = vsub.s32 0, %v23
    %v25 = vrot.slane %v20, %v24
    %vm27 = vcmask 261120
    %v29 = vsel %vm27, %v15, 0
    %31 = vmatprep.subr.mxu0 0.0
    %32 = vmatpush1.msra.mxu0 %v16
    %33 = vmatprep.subr.mxu0 0.0
    %34 = vmatpush1.msra.mxu0 %v17
    %35 = vmatprep.subr.mxu0 0.0
    %36 = vmatpush1.msra.mxu0 %v18
    %37 = vmatprep.subr.mxu0 0.0
    %38 = vmatpush1.msra.mxu0 %v19
    %39 = vmatprep.subr.mxu0 0.0
    %40 = vmatpush1.msra.mxu0 0.0
    %41 = vmatprep.subr.mxu0 0.0
    %42 = vmatpush1.msra.mxu0 0.0
    %43 = vmatprep.subr.mxu0 0.0
    %44 = vmatpush1.msra.mxu0 0.0
    %45 = vmatprep.subr.mxu0 0.0
    %46 = vmatpush1.msra.mxu0 0.0
    %47 = vmatprep.subr.mxu0 0.0
    %48 = vmatpush1.msra.mxu0 0.0
    %49 = vmatprep.subr.mxu0 0.0
    %50 = vmatpush1.msra.mxu0 0.0
    %51 = vmatprep.subr.mxu0 0.0
    %52 = vmatpush1.msra.mxu0 0.0
    %53 = vmatprep.subr.mxu0 0.0
    %54 = vmatpush1.msra.mxu0 0.0
    %55 = vmatprep.subr.mxu0 0.0
    %56 = vmatpush1.msra.mxu0 0.0
    %57 = vmatprep.subr.mxu0 0.0
    %58 = vmatpush1.msra.mxu0 0.0
    %59 = vmatprep.subr.mxu0 0.0
    %60 = vmatpush1.msra.mxu0 0.0
    %61 = vmatprep.subr.mxu0 0.0
    %62 = vmatpush1.msra.mxu0 0.0
    %63 = vmatprep.subr.mxu0 0.0
    %64 = vmatpush1.msra.mxu0 0.0
    %65 = vmatprep.subr.mxu0 0.0
    %66 = vmatpush1.msra.mxu0 0.0
    %67 = vmatprep.subr.mxu0 0.0
    %68 = vmatpush1.msra.mxu0 0.0
    %69 = vmatprep.subr.mxu0 0.0
    %70 = vmatpush1.msra.mxu0 0.0
    %71 = vmatprep.subr.mxu0 0.0
    %72 = vmatpush1.msra.mxu0 0.0
    %73 = vmatprep.subr.mxu0 0.0
    %74 = vmatpush1.msra.mxu0 0.0
    %75 = vmatprep.subr.mxu0 0.0
    %76 = vmatpush1.msra.mxu0 0.0
    %77 = vmatprep.subr.mxu0 0.0
    %78 = vmatpush1.msra.mxu0 0.0
    %79 = vmatprep.subr.mxu0 0.0
    %80 = vmatpush1.msra.mxu0 0.0
    %81 = vmatprep.subr.mxu0 0.0
    %82 = vmatpush1.msra.mxu0 0.0
    %83 = vmatprep.subr.mxu0 0.0
    %84 = vmatpush1.msra.mxu0 0.0
    %85 = vmatprep.subr.mxu0 0.0
    %86 = vmatpush1.msra.mxu0 0.0
    %87 = vmatprep.subr.mxu0 0.0
    %88 = vmatpush1.msra.mxu0 0.0
    %89 = vmatprep.subr.mxu0 0.0
    %90 = vmatpush1.msra.mxu0 0.0
    %91 = vmatprep.subr.mxu0 0.0
    %92 = vmatpush1.msra.mxu0 0.0
    %93 = vmatprep.subr.mxu0 0.0
    %94 = vmatpush1.msra.mxu0 0.0
    %95 = vmatprep.mubr.f32.mxu0 0.0
    %96 = vmatmul.mubr.f32.gmra.mrb[0].mxu0 %v29
    %v97 = vpop.f32.mrb[0].mxu0
    %v98 = vadd.f32 %v25, %v97
    %v99 = vpop.f32.mrb[0].mxu0
    %100 = vdwg.mxu0
    %101 = vst [vmem:[#allocation2] sm:$0x3] %v98
    // Predicated region
    $region14: #{gcnbb_forward.43} parent=1 // pred_check
      _
    $region15: #{gcnbb_forward.43} parent=1 // pred_check_branch
      %103 = sbr.rel (0) target = $region17
    $region16: #{gcnbb_forward.43} parent=1 // pred_region
      %s105 = ssub.s32 32, 32
      %106 = vsyncadd [#allocation3], %s105
      %s108 = sshll.u32 [#allocation2], 4
      %s109 = int_to_ptr.vmem [resolvable:$true] %s108
      %111 = dma.vmem_to_hbm [thread:$0]  %s109, 32, %s3, [#allocation3]
    $region17: #{gcnbb_forward.43} parent=1 // pred_fallthru
      _
    // Predicated region
    $region18: #{gcnbb_forward.43} parent=1 // pred_check
      _
    $region19: #{gcnbb_forward.43} parent=1 // pred_check_branch
      %113 = sbr.rel (0) target = $region21
    $region20: #{gcnbb_forward.43} parent=1 // pred_region
      %114 = dma.done [#allocation3], 32
    $region21: #{gcnbb_forward.43} parent=1 // pred_fallthru
      _
    %115 = vsyncpa [#allocation3], 1

</llo_original>
